<compile_context>
chip_gen: v6e
topology: v6e:2x2x1
jax: 0.10.0
libtpu: 0.0.40
codegen_flags: <defaults>
</compile_context>

<pallas_src>
import functools

import jax
import jax.numpy as jnp
from jax import lax
from jax.experimental import pallas as pl
from jax.experimental.pallas import tpu as pltpu


def _round_up(n: int, m: int) -> int:
    return (n + m - 1) // m * m


def _mlp_kernel(x_ref, w1_ref, b1_ref, w2_ref, b2_ref, w3_ref, b3_ref, o_ref):
    # In-kernel cast: x streams from HBM in its native dtype; the VPU cast hides
    # under the DMA of the next tile.
    xb = x_ref[...].astype(jnp.bfloat16)
    # layer1 + ReLU: bf16 matmul, f32 accumulate, f32 epilogue.
    h1 = jnp.dot(xb, w1_ref[...], preferred_element_type=jnp.float32)
    h1 = jnp.maximum(h1 + b1_ref[...], 0.0)
    # layer2 + ReLU (K padded to 256 -> full MXU contraction group, lane-dense h2).
    h2 = jnp.dot(h1.astype(jnp.bfloat16), w2_ref[...],
                 preferred_element_type=jnp.float32)
    h2 = jnp.maximum(h2 + b2_ref[...], 0.0)
    # output layer (N=1): contract w3 (1, H2p) against h2 (TB, H2p) so the result
    # lands lane-dense as (1, TB) -> unmasked output stores.
    out = lax.dot_general(
        w3_ref[...], h2.astype(jnp.bfloat16),
        dimension_numbers=(((1,), (1,)), ((), ())),
        preferred_element_type=jnp.float32)
    o_ref[...] = (out + b3_ref[0]).astype(o_ref.dtype)


def prepare_discriminator_params(params, *, h1_pad: int = 256, h2_pad: int = 128):
    """One-time prep: cast matmul operands to bf16 and zero-pad hidden dims so the
    kernel's intermediates are lane-dense. Exact w.r.t. the unpadded math."""
    w1 = params["w1"].astype(jnp.bfloat16)   # (F,  H1)
    w2 = params["w2"].astype(jnp.bfloat16)   # (H1, H2)
    w3 = params["w3"].astype(jnp.bfloat16)   # (1,  H2)  (PyTorch (out, in) layout)
    b1 = params["b1"].astype(jnp.float32)    # (1,  H1)
    b2 = params["b2"].astype(jnp.float32)    # (1,  H2)
    b3 = params["b3"].astype(jnp.float32).reshape(1)  # scalar via SMEM

    h1 = w1.shape[1]
    h2 = w2.shape[1]
    h1p = _round_up(max(h1, h1_pad), 128)
    h2p = _round_up(max(h2, h2_pad), 128)

    w1 = jnp.pad(w1, ((0, 0), (0, h1p - h1)))
    b1 = jnp.pad(b1, ((0, 0), (0, h1p - h1)))
    w2 = jnp.pad(w2, ((0, h1p - h1), (0, h2p - h2)))
    b2 = jnp.pad(b2, ((0, 0), (0, h2p - h2)))
    w3 = jnp.pad(w3, ((0, 0), (0, h2p - h2)))
    return {"w1": w1, "b1": b1, "w2": w2, "b2": b2, "w3": w3, "b3": b3}


def _choose_tb(batch: int, block_b: int) -> int:
    """Pick a batch tile: sublane-aligned, lane-dense (mult of 128) when possible,
    >= 2 grid steps for large batches (v7x megacore), capped by block_b / VMEM."""
    b8 = _round_up(batch, 8)
    if b8 <= 256:
        return b8                                   # single small tile
    tb = min(block_b, _round_up(pl.cdiv(b8, 2), 128))
    return tb


@functools.partial(jax.jit, static_argnames=("block_b",))
def discriminator_forward(x, prepared, *, block_b: int = 2048):
    """x: (B, input_size) float (native dtype, cast happens in-kernel).
    prepared: output of prepare_discriminator_params. Returns (B, 1) f32 logits."""
    B, F = x.shape
    w1, b1 = prepared["w1"], prepared["b1"]
    w2, b2 = prepared["w2"], prepared["b2"]
    w3, b3 = prepared["w3"], prepared["b3"]

    tb = _choose_tb(B, block_b)
    b_pad = _round_up(B, tb)
    if b_pad != B:
        # Only hit when tb does not divide B (rare for power-of-two batches).
        x = jnp.pad(x, ((0, b_pad - B), (0, 0)))

    resident = lambda a: pl.BlockSpec(a.shape, lambda i: (0, 0))  # VMEM-resident
    out = pl.pallas_call(
        _mlp_kernel,
        out_shape=jax.ShapeDtypeStruct((1, b_pad), jnp.float32),
        grid_spec=pltpu.PrefetchScalarGridSpec(
            num_scalar_prefetch=0,
            grid=(b_pad // tb,),
            in_specs=[
                pl.BlockSpec((tb, F), lambda i: (i, 0)),            # x tile (pipelined)
                resident(w1), resident(b1),
                resident(w2), resident(b2),
                resident(w3),
                pl.BlockSpec(memory_space=pltpu.MemorySpace.SMEM),  # b3 scalar
            ],
            out_specs=pl.BlockSpec((1, tb), lambda i: (0, i)),      # lane-dense output
        ),
        compiler_params=pltpu.CompilerParams(
            dimension_semantics=("parallel",),  # batch tiles shard across TCs on v7x
        ),
    )(x, w1, b1, w2, b2, w3, b3)
    return out.reshape(b_pad, 1)[:B]


def init_discriminator_params(key, input_size=512, hidden_size1=200, hidden_size2=20):
    """nn.Linear default init U(-1/sqrt(fan_in), 1/sqrt(fan_in)).
    w1/w2 stored as (in, out); w3 kept in PyTorch (out, in) = (1, hidden2) layout."""
    def uni(k, shape, fan_in):
        bound = 1.0 / (fan_in ** 0.5)
        return jax.random.uniform(k, shape, jnp.float32, -bound, bound)
    k = jax.random.split(key, 6)
    return {
        "w1": uni(k[0], (input_size, hidden_size1), input_size),
        "b1": uni(k[1], (1, hidden_size1), input_size),
        "w2": uni(k[2], (hidden_size1, hidden_size2), hidden_size1),
        "b2": uni(k[3], (1, hidden_size2), hidden_size1),
        "w3": uni(k[4], (1, hidden_size2), hidden_size2),
        "b3": uni(k[5], (1, 1), hidden_size2),
    }


def discriminator_ref(x, p):
    """Pure-JAX reference using the same bf16-operand / f32-accumulate recipe."""
    xb = x.astype(jnp.bfloat16)
    w1 = p["w1"].astype(jnp.bfloat16)
    w2 = p["w2"].astype(jnp.bfloat16)
    w3 = p["w3"].astype(jnp.bfloat16)
    h1 = jnp.maximum(jnp.dot(xb, w1, preferred_element_type=jnp.float32) + p["b1"], 0.0)
    h2 = jnp.maximum(jnp.dot(h1.astype(jnp.bfloat16), w2,
                             preferred_element_type=jnp.float32) + p["b2"], 0.0)
    return jnp.dot(h2.astype(jnp.bfloat16), w3.T,
                   preferred_element_type=jnp.float32) + p["b3"]


if __name__ == "__main__":
    key = jax.random.PRNGKey(0)
    k_params, k_x = jax.random.split(key)

    input_size, hidden1, hidden2 = 512, 200, 20
    batch = 512  # small; tb=256 -> grid of 2 (exercises resident weights + pipelined x)

    params = init_discriminator_params(k_params, input_size, hidden1, hidden2)
    prepared = prepare_discriminator_params(params)  # one-time cast + hidden-dim pad
    x = jax.random.normal(k_x, (batch, input_size), jnp.float32)

    out = discriminator_forward(x, prepared)
    out = jax.block_until_ready(out)

    ref = discriminator_ref(x, params)
    assert out.shape == (batch, 1), out.shape
    max_err = float(jnp.max(jnp.abs(out - ref)))
    assert jnp.allclose(out, ref, atol=1e-3, rtol=1e-3), max_err

    print("KERNEL_OK")
</pallas_src>

<mosaic_0001>
module attributes {stable_mosaic.version = 11 : i64} {
  func.func @_mlp_kernel(%arg0: i32, %arg1: memref<256x512xf32, #tpu.memory_space<vmem>>, %arg2: memref<512x256xbf16, #tpu.memory_space<vmem>>, %arg3: memref<1x256xf32, #tpu.memory_space<vmem>>, %arg4: memref<256x128xbf16, #tpu.memory_space<vmem>>, %arg5: memref<1x128xf32, #tpu.memory_space<vmem>>, %arg6: memref<1x128xbf16, #tpu.memory_space<vmem>>, %arg7: memref<1xf32, #tpu.memory_space<smem>>, %arg8: memref<1x256xf32, #tpu.memory_space<vmem>>) attributes {dimension_semantics = [#tpu.dimension_semantics<parallel>], iteration_bounds = array<i64: 2>, scalar_prefetch = 0 : i64, scratch_operands = 0 : i64, tpu.core_type = #tpu.core_type<tc>, window_params = [{transform_indices = @transform_0, window_bounds = array<i64: 256, 512>}, {pipeline_mode = #tpu.pipeline_mode<synchronous>, transform_indices = @transform_1, window_bounds = array<i64: 512, 256>}, {pipeline_mode = #tpu.pipeline_mode<synchronous>, transform_indices = @transform_2, window_bounds = array<i64: 1, 256>}, {pipeline_mode = #tpu.pipeline_mode<synchronous>, transform_indices = @transform_3, window_bounds = array<i64: 256, 128>}, {pipeline_mode = #tpu.pipeline_mode<synchronous>, transform_indices = @transform_4, window_bounds = array<i64: 1, 128>}, {pipeline_mode = #tpu.pipeline_mode<synchronous>, transform_indices = @transform_5, window_bounds = array<i64: 1, 128>}, {transform_indices = @transform_6, window_bounds = array<i64: 1>}, {transform_indices = @transform_7, window_bounds = array<i64: 1, 256>}]} {
    %c0 = arith.constant 0 : index
    %c0_0 = arith.constant 0 : index
    %0 = vector.load %arg1[%c0, %c0_0] : memref<256x512xf32, #tpu.memory_space<vmem>>, vector<256x512xf32>
    %1 = arith.truncf %0 : vector<256x512xf32> to vector<256x512xbf16>
    %c0_1 = arith.constant 0 : index
    %c0_2 = arith.constant 0 : index
    %2 = vector.load %arg2[%c0_1, %c0_2] : memref<512x256xbf16, #tpu.memory_space<vmem>>, vector<512x256xbf16>
    %cst = arith.constant dense<0.000000e+00> : vector<256x256xf32>
    %3 = tpu.matmul %1, %2, %cst {dimension_numbers = #tpu.dot_dimension_numbers<[1], [0], [0], [1], [0, 0, 1, 1], [], []>} : vector<256x512xbf16>, vector<512x256xbf16>, vector<256x256xf32> -> vector<256x256xf32>
    %c0_3 = arith.constant 0 : index
    %c0_4 = arith.constant 0 : index
    %4 = vector.load %arg3[%c0_3, %c0_4] : memref<1x256xf32, #tpu.memory_space<vmem>>, vector<1x256xf32>
    %5 = vector.broadcast %4 : vector<1x256xf32> to vector<256x256xf32>
    %6 = arith.addf %3, %5 : vector<256x256xf32>
    %cst_5 = arith.constant 0.000000e+00 : f32
    %7 = vector.broadcast %cst_5 : f32 to vector<256x256xf32>
    %8 = arith.maximumf %6, %7 : vector<256x256xf32>
    %9 = arith.truncf %8 : vector<256x256xf32> to vector<256x256xbf16>
    %c0_6 = arith.constant 0 : index
    %c0_7 = arith.constant 0 : index
    %10 = vector.load %arg4[%c0_6, %c0_7] : memref<256x128xbf16, #tpu.memory_space<vmem>>, vector<256x128xbf16>
    %cst_8 = arith.constant dense<0.000000e+00> : vector<256x128xf32>
    %11 = tpu.matmul %9, %10, %cst_8 {dimension_numbers = #tpu.dot_dimension_numbers<[1], [0], [0], [1], [0, 0, 1, 1], [], []>} : vector<256x256xbf16>, vector<256x128xbf16>, vector<256x128xf32> -> vector<256x128xf32>
    %c0_9 = arith.constant 0 : index
    %c0_10 = arith.constant 0 : index
    %12 = vector.load %arg5[%c0_9, %c0_10] : memref<1x128xf32, #tpu.memory_space<vmem>>, vector<1x128xf32>
    %13 = vector.broadcast %12 : vector<1x128xf32> to vector<256x128xf32>
    %14 = arith.addf %11, %13 : vector<256x128xf32>
    %cst_11 = arith.constant 0.000000e+00 : f32
    %15 = vector.broadcast %cst_11 : f32 to vector<256x128xf32>
    %16 = arith.maximumf %14, %15 : vector<256x128xf32>
    %c0_12 = arith.constant 0 : index
    %c0_13 = arith.constant 0 : index
    %17 = vector.load %arg6[%c0_12, %c0_13] : memref<1x128xbf16, #tpu.memory_space<vmem>>, vector<1x128xbf16>
    %18 = arith.truncf %16 : vector<256x128xf32> to vector<256x128xbf16>
    %cst_14 = arith.constant dense<0.000000e+00> : vector<1x256xf32>
    %19 = tpu.matmul %17, %18, %cst_14 {dimension_numbers = #tpu.dot_dimension_numbers<[1], [1], [0], [0], [0, 0, 1, 0], [], []>} : vector<1x128xbf16>, vector<256x128xbf16>, vector<1x256xf32> -> vector<1x256xf32>
    %c0_15 = arith.constant 0 : index
    %20 = memref.load %arg7[%c0_15] : memref<1xf32, #tpu.memory_space<smem>>
    %21 = vector.broadcast %20 : f32 to vector<1x256xf32>
    %22 = arith.addf %19, %21 : vector<1x256xf32>
    %c0_16 = arith.constant 0 : index
    %c0_17 = arith.constant 0 : index
    %23 = vector.load %arg8[%c0_16, %c0_17] : memref<1x256xf32, #tpu.memory_space<vmem>>, vector<1x256xf32>
    tpu.vector_store %arg8[%c0_16, %c0_17], %22 {strides = array<i32>} : memref<1x256xf32, #tpu.memory_space<vmem>>, vector<1x256xf32>,
    return
  }
  func.func @transform_0(%arg0: i32) -> (i32, i32) {
    %c0_i32 = arith.constant 0 : i32
    %c0_i32_0 = arith.constant 0 : i32
    return %arg0, %c0_i32 : i32, i32
  }
  func.func @transform_1(%arg0: i32) -> (i32, i32) {
    %c0_i32 = arith.constant 0 : i32
    %c0_i32_0 = arith.constant 0 : i32
    %c0_i32_1 = arith.constant 0 : i32
    return %c0_i32, %c0_i32_0 : i32, i32
  }
  func.func @transform_2(%arg0: i32) -> (i32, i32) {
    %c0_i32 = arith.constant 0 : i32
    %c0_i32_0 = arith.constant 0 : i32
    %c0_i32_1 = arith.constant 0 : i32
    return %c0_i32, %c0_i32_0 : i32, i32
  }
  func.func @transform_3(%arg0: i32) -> (i32, i32) {
    %c0_i32 = arith.constant 0 : i32
    %c0_i32_0 = arith.constant 0 : i32
    %c0_i32_1 = arith.constant 0 : i32
    return %c0_i32, %c0_i32_0 : i32, i32
  }
  func.func @transform_4(%arg0: i32) -> (i32, i32) {
    %c0_i32 = arith.constant 0 : i32
    %c0_i32_0 = arith.constant 0 : i32
    %c0_i32_1 = arith.constant 0 : i32
    return %c0_i32, %c0_i32_0 : i32, i32
  }
  func.func @transform_5(%arg0: i32) -> (i32, i32) {
    %c0_i32 = arith.constant 0 : i32
    %c0_i32_0 = arith.constant 0 : i32
    %c0_i32_1 = arith.constant 0 : i32
    return %c0_i32, %c0_i32_0 : i32, i32
  }
  func.func @transform_6(%arg0: i32) -> i32 {
    %c0_i32 = arith.constant 0 : i32
    %c0_i32_0 = arith.constant 0 : i32
    return %c0_i32 : i32
  }
  func.func @transform_7(%arg0: i32) -> (i32, i32) {
    %c0_i32 = arith.constant 0 : i32
    %c0_i32_0 = arith.constant 0 : i32
    return %c0_i32, %arg0 : i32, i32
  }
}

</mosaic_0001>

<llo_original>
// kernel: discriminator_forward.1
$region0: #{discriminator_forward.1}
  #allocation0 [shape = 'u32[]', space=smem, size = 0x4, offset = 0x4, fixed_abs, tag = 'smem constant byte address 0x4 - core index']
  #allocation1 [shape = 'u32[144,128]{1,0:T(1,128)}', space=vmem, size = 0x12000, scoped, tag = 'internal scratch']
  #allocation2 [shape = 'f32[1]{0:T(128)S(6)}', space=smem, size = 0x200, scoped, tag = 'scoped memory for discriminator_forward.1']
  %s0 = inlined_call_operand.hbm [shape: f32[512,512], index: 0, kind: input, shape index: {}]
  %s1 = inlined_call_operand.hbm [shape: bf16[512,256], index: 1, kind: input, shape index: {}]
  %s2 = inlined_call_operand.vmem [shape: f32[1,256], index: 2, kind: input, shape index: {}]
  %s3 = inlined_call_operand.hbm [shape: bf16[256,128], index: 3, kind: input, shape index: {}]
  %s4 = inlined_call_operand.vmem [shape: f32[1,128], index: 4, kind: input, shape index: {}]
  %s5 = inlined_call_operand.vmem [shape: bf16[1,128], index: 5, kind: input, shape index: {}]
  %s6 = inlined_call_operand.<no memory space> [shape: f32[1], index: 6, kind: input, shape index: {}]
  %s7 = inlined_call_operand.hbm [shape: f32[1,512], index: 7, kind: output, shape index: {}]
  %s8 = sld [smem:[#allocation0]]
  $region73: #{discriminator_forward.1} parent=0
    _
  %s10 = ssub.s32 1, %s8
  %s11 = scalar_select 0, %s10, %s8
  %12 = sst [smem:[#allocation2]] %s6
  $region1: #{discriminator_forward.1} parent=0
    #allocation3 [shape = 'u8[1048576]{0}', space=vmem, size = 0x100000, scoped, tag = 'input window, operand 0']
    #allocation4 [shape = 's32[2]{0}', space=sflag, size = 0x8, scoped, tag = 'scoped memory for discriminator_forward.1']
    #allocation5 [shape = 's32[2]{0}', space=sflag, size = 0x8, scoped, tag = 'scoped memory for discriminator_forward.1']
    #allocation6 [shape = 'u8[262144]{0}', space=vmem, size = 0x40000, scoped, tag = 'input window, operand 1, single buffered']
    #allocation7 [shape = 's32[1]{0}', space=sflag, size = 0x4, scoped, tag = 'scoped memory for discriminator_forward.1']
    #allocation8 [shape = 'u8[65536]{0}', space=vmem, size = 0x10000, scoped, tag = 'input window, operand 3, single buffered']
    #allocation9 [shape = 'u8[2048]{0}', space=vmem, size = 0x800, scoped, tag = 'output window, operand 0']
    %13 = vsyncpa [#allocation4], 0
    %s14 = scalar_lea.sflag [#allocation4], 1
    %15 = vsyncpa %s14, 0
    %16 = vsyncpa [#allocation7], 0
    %17 = vsyncpa [#allocation5], 0
    %s18 = scalar_lea.sflag [#allocation5], 1
    %19 = vsyncpa %s18, 0
    loop: start=0, step=1, limit=4
    $region2: #{discriminator_forward.1} parent=1 // loop_pre_header
      _
    $region3: #{discriminator_forward.1} parent=1 // loop_header
      %s21 = sphi 0, %s25
      %p22 = scmp.ge.s32.totalorder %s21, 4
      %s31 = sphi 0, %s33
      %s34 = sphi 0, %s31
      %s35 = sphi 0, %s34
      %s51 = sphi 0, %s35
      %s55 = sphi 0, %s55
      %s57 = sphi 0, %s55
      %s58 = sphi 0, %s57
      %s72 = sphi 0, %s58
      %s76 = sphi 0, %s76
      %s78 = sphi 0, %s76
      %s79 = sphi 0, %s78
      %s93 = sphi 0, %s79
      %s97 = sphi 0, %s97
      %s99 = sphi 0, %s97
      %s100 = sphi 0, %s99
      %s114 = sphi 0, %s100
      %s118 = sphi 0, %s118
      %s120 = sphi 0, %s118
      %s121 = sphi 0, %s120
      %s135 = sphi 0, %s121
      %s139 = sphi 0, %s139
      %s141 = sphi 0, %s139
      %s142 = sphi 0, %s141
      %s156 = sphi 0, %s142
      %s160 = sphi 0, %s160
      %s162 = sphi 0, %s160
      %s163 = sphi 0, %s162
      %s177 = sphi 0, %s163
      %s183 = sphi 0, %s185
      %s186 = sphi 0, %s183
      %s187 = sphi 0, %s186
      %s203 = sphi 0, %s187
    $region4: #{discriminator_forward.1} parent=1 // loop_header_branch
      %24 = sbr.rel (%p22) target = $region8
    $region5: #{discriminator_forward.1} parent=1 // loop_body
      %s26 = ssub.s32 %s21, 1
      %s27 = ssub.s32 %s21, 2
      %s28 = sadd.s32 %s21, 1
      %s29 = ssub.s32 %s21, %s28
      %p30 = scmp.eq.s32.totalorder %s29, 0
      %s32 = sadd.s32 %s31, 1
      %s33 = scalar_select %p30, %s31, %s32
      %p36 = pneg %p30
      %p37 = scmp.eq.s32.totalorder %s21, 1
      %p38 = por %p36, %p37
      %p39 = scmp.ne.s32.totalorder %s31, %s34
      %p40 = scmp.eq.s32.totalorder %s21, 0
      %p41 = por %p39, %p40
      %p42 = scmp.ne.s32.totalorder %s31, %s34
      %p43 = scmp.eq.s32.totalorder %s26, 1
      %p44 = por %p42, %p43
      %p45 = scmp.ne.s32.totalorder %s34, %s35
      %p46 = scmp.eq.s32.totalorder %s26, 0
      %p47 = por %p45, %p46
      %p48 = scmp.ne.s32.totalorder %s34, %s35
      %p49 = scmp.eq.s32.totalorder %s27, 1
      %p50 = por %p48, %p49
      %p52 = scmp.ne.s32.totalorder %s35, %s51
      %p53 = scmp.eq.s32.totalorder %s27, 0
      %p54 = por %p52, %p53
      %s56 = sadd.s32 %s55, 1
      %p59 = scmp.eq.s32.totalorder %s21, 1
      %p60 = scmp.ne.s32.totalorder %s55, %s57
      %p61 = scmp.eq.s32.totalorder %s21, 0
      %p62 = por %p60, %p61
      %p63 = scmp.ne.s32.totalorder %s55, %s57
      %p64 = scmp.eq.s32.totalorder %s26, 1
      %p65 = por %p63, %p64
      %p66 = scmp.ne.s32.totalorder %s57, %s58
      %p67 = scmp.eq.s32.totalorder %s26, 0
      %p68 = por %p66, %p67
      %p69 = scmp.ne.s32.totalorder %s57, %s58
      %p70 = scmp.eq.s32.totalorder %s27, 1
      %p71 = por %p69, %p70
      %p73 = scmp.ne.s32.totalorder %s58, %s72
      %p74 = scmp.eq.s32.totalorder %s27, 0
      %p75 = por %p73, %p74
      %s77 = sadd.s32 %s76, 1
      %p80 = scmp.eq.s32.totalorder %s21, 1
      %p81 = scmp.ne.s32.totalorder %s76, %s78
      %p82 = scmp.eq.s32.totalorder %s21, 0
      %p83 = por %p81, %p82
      %p84 = scmp.ne.s32.totalorder %s76, %s78
      %p85 = scmp.eq.s32.totalorder %s26, 1
      %p86 = por %p84, %p85
      %p87 = scmp.ne.s32.totalorder %s78, %s79
      %p88 = scmp.eq.s32.totalorder %s26, 0
      %p89 = por %p87, %p88
      %p90 = scmp.ne.s32.totalorder %s78, %s79
      %p91 = scmp.eq.s32.totalorder %s27, 1
      %p92 = por %p90, %p91
      %p94 = scmp.ne.s32.totalorder %s79, %s93
      %p95 = scmp.eq.s32.totalorder %s27, 0
      %p96 = por %p94, %p95
      %s98 = sadd.s32 %s97, 1
      %p101 = scmp.eq.s32.totalorder %s21, 1
      %p102 = scmp.ne.s32.totalorder %s97, %s99
      %p103 = scmp.eq.s32.totalorder %s21, 0
      %p104 = por %p102, %p103
      %p105 = scmp.ne.s32.totalorder %s97, %s99
      %p106 = scmp.eq.s32.totalorder %s26, 1
      %p107 = por %p105, %p106
      %p108 = scmp.ne.s32.totalorder %s99, %s100
      %p109 = scmp.eq.s32.totalorder %s26, 0
      %p110 = por %p108, %p109
      %p111 = scmp.ne.s32.totalorder %s99, %s100
      %p112 = scmp.eq.s32.totalorder %s27, 1
      %p113 = por %p111, %p112
      %p115 = scmp.ne.s32.totalorder %s100, %s114
      %p116 = scmp.eq.s32.totalorder %s27, 0
      %p117 = por %p115, %p116
      %s119 = sadd.s32 %s118, 1
      %p122 = scmp.eq.s32.totalorder %s21, 1
      %p123 = scmp.ne.s32.totalorder %s118, %s120
      %p124 = scmp.eq.s32.totalorder %s21, 0
      %p125 = por %p123, %p124
      %p126 = scmp.ne.s32.totalorder %s118, %s120
      %p127 = scmp.eq.s32.totalorder %s26, 1
      %p128 = por %p126, %p127
      %p129 = scmp.ne.s32.totalorder %s120, %s121
      %p130 = scmp.eq.s32.totalorder %s26, 0
      %p131 = por %p129, %p130
      %p132 = scmp.ne.s32.totalorder %s120, %s121
      %p133 = scmp.eq.s32.totalorder %s27, 1
      %p134 = por %p132, %p133
      %p136 = scmp.ne.s32.totalorder %s121, %s135
      %p137 = scmp.eq.s32.totalorder %s27, 0
      %p138 = por %p136, %p137
      %s140 = sadd.s32 %s139, 1
      %p143 = scmp.eq.s32.totalorder %s21, 1
      %p144 = scmp.ne.s32.totalorder %s139, %s141
      %p145 = scmp.eq.s32.totalorder %s21, 0
      %p146 = por %p144, %p145
      %p147 = scmp.ne.s32.totalorder %s139, %s141
      %p148 = scmp.eq.s32.totalorder %s26, 1
      %p149 = por %p147, %p148
      %p150 = scmp.ne.s32.totalorder %s141, %s142
      %p151 = scmp.eq.s32.totalorder %s26, 0
      %p152 = por %p150, %p151
      %p153 = scmp.ne.s32.totalorder %s141, %s142
      %p154 = scmp.eq.s32.totalorder %s27, 1
      %p155 = por %p153, %p154
      %p157 = scmp.ne.s32.totalorder %s142, %s156
      %p158 = scmp.eq.s32.totalorder %s27, 0
      %p159 = por %p157, %p158
      %s161 = sadd.s32 %s160, 1
      %p164 = scmp.eq.s32.totalorder %s21, 1
      %p165 = scmp.ne.s32.totalorder %s160, %s162
      %p166 = scmp.eq.s32.totalorder %s21, 0
      %p167 = por %p165, %p166
      %p168 = scmp.ne.s32.totalorder %s160, %s162
      %p169 = scmp.eq.s32.totalorder %s26, 1
      %p170 = por %p168, %p169
      %p171 = scmp.ne.s32.totalorder %s162, %s163
      %p172 = scmp.eq.s32.totalorder %s26, 0
      %p173 = por %p171, %p172
      %p174 = scmp.ne.s32.totalorder %s162, %s163
      %p175 = scmp.eq.s32.totalorder %s27, 1
      %p176 = por %p174, %p175
      %p178 = scmp.ne.s32.totalorder %s163, %s177
      %p179 = scmp.eq.s32.totalorder %s27, 0
      %p180 = por %p178, %p179
      %s181 = ssub.s32 %s21, %s28
      %p182 = scmp.eq.s32.totalorder %s181, 0
      %s184 = sadd.s32 %s183, 1
      %s185 = scalar_select %p182, %s183, %s184
      %p188 = pneg %p182
      %p189 = scmp.eq.s32.totalorder %s21, 1
      %p190 = por %p188, %p189
      %p191 = scmp.ne.s32.totalorder %s183, %s186
      %p192 = scmp.eq.s32.totalorder %s21, 0
      %p193 = por %p191, %p192
      %p194 = scmp.ne.s32.totalorder %s183, %s186
      %p195 = scmp.eq.s32.totalorder %s26, 1
      %p196 = por %p194, %p195
      %p197 = scmp.ne.s32.totalorder %s186, %s187
      %p198 = scmp.eq.s32.totalorder %s26, 0
      %p199 = por %p197, %p198
      %p200 = scmp.ne.s32.totalorder %s186, %s187
      %p201 = scmp.eq.s32.totalorder %s27, 1
      %p202 = por %p200, %p201
      %p204 = scmp.ne.s32.totalorder %s187, %s203
      %p205 = scmp.eq.s32.totalorder %s27, 0
      %p206 = por %p204, %p205
      %p207 = scmp.le.s32.totalorder 1, %s21
      %p208 = scmp.lt.s32.totalorder %s21, 3
      %p209 = pnand %p207, %p208
      %p210 = pneg %p209
      // Predicated region
      $region9: #{discriminator_forward.1} parent=5 // pred_check
        _
      $region10: #{discriminator_forward.1} parent=5 // pred_check_branch
        %212 = sbr.rel (%p209) target = $region12
      $region11: #{discriminator_forward.1} parent=5 // pred_region
        %s213 = ssub.s32 %s21, 1
        // Predicated region
        $region13: #{discriminator_forward.1} parent=11 // pred_check
          %p214 = pneg %p68
        $region14: #{discriminator_forward.1} parent=11 // pred_check_branch
          %216 = sbr.rel (%p214) target = $region16
        $region15: #{discriminator_forward.1} parent=11 // pred_region
          %s218 = ssub.s32 8192, 8192
          %219 = vsyncadd [#allocation7], %s218
          %s220 = sshll.u32 [#allocation6], 4
          %s221 = int_to_ptr.vmem [resolvable:$true] %s220
          %226 = dma.hbm_to_vmem [thread:$0]  %s1, 8192, %s221, [#allocation7], 128, 128, 8
        $region16: #{discriminator_forward.1} parent=11 // pred_fallthru
          _
        // Predicated region
        $region17: #{discriminator_forward.1} parent=11 // pred_check
          %p227 = pneg %p89
        $region18: #{discriminator_forward.1} parent=11 // pred_check_branch
          %229 = sbr.rel (%p227) target = $region20
        $region19: #{discriminator_forward.1} parent=11 // pred_region
          _
        $region20: #{discriminator_forward.1} parent=11 // pred_fallthru
          _
        // Predicated region
        $region21: #{discriminator_forward.1} parent=11 // pred_check
          %p230 = pneg %p110
        $region22: #{discriminator_forward.1} parent=11 // pred_check_branch
          %232 = sbr.rel (%p230) target = $region24
        $region23: #{discriminator_forward.1} parent=11 // pred_region
          %s234 = ssub.s32 2048, 2048
          %235 = vsyncadd [#allocation7], %s234
          %s236 = sshll.u32 [#allocation8], 4
          %s237 = int_to_ptr.vmem [resolvable:$true] %s236
          %242 = dma.hbm_to_vmem [thread:$0]  %s3, 2048, %s237, [#allocation7], 64, 64, 4
        $region24: #{discriminator_forward.1} parent=11 // pred_fallthru
          _
        // Predicated region
        $region25: #{discriminator_forward.1} parent=11 // pred_check
          %p243 = pneg %p131
        $region26: #{discriminator_forward.1} parent=11 // pred_check_branch
          %245 = sbr.rel (%p243) target = $region28
        $region27: #{discriminator_forward.1} parent=11 // pred_region
          _
        $region28: #{discriminator_forward.1} parent=11 // pred_fallthru
          _
        // Predicated region
        $region29: #{discriminator_forward.1} parent=11 // pred_check
          %p246 = pneg %p152
        $region30: #{discriminator_forward.1} parent=11 // pred_check_branch
          %248 = sbr.rel (%p246) target = $region32
        $region31: #{discriminator_forward.1} parent=11 // pred_region
          _
        $region32: #{discriminator_forward.1} parent=11 // pred_fallthru
          _
        // Predicated region
        $region33: #{discriminator_forward.1} parent=11 // pred_check
          %p249 = pneg %p173
        $region34: #{discriminator_forward.1} parent=11 // pred_check_branch
          %251 = sbr.rel (%p249) target = $region36
        $region35: #{discriminator_forward.1} parent=11 // pred_region
          _
        $region36: #{discriminator_forward.1} parent=11 // pred_fallthru
          _
      $region12: #{discriminator_forward.1} parent=5 // pred_fallthru
        _
      %p252 = scmp.lt.s32.totalorder %s21, 2
      // Predicated region
      $region37: #{discriminator_forward.1} parent=5 // pred_check
        %p253 = pneg %p252
      $region38: #{discriminator_forward.1} parent=5 // pred_check_branch
        %255 = sbr.rel (%p253) target = $region40
      $region39: #{discriminator_forward.1} parent=5 // pred_region
        // Predicated region
        $region41: #{discriminator_forward.1} parent=39 // pred_check
          %p256 = pneg %p41
        $region42: #{discriminator_forward.1} parent=39 // pred_check_branch
          %258 = sbr.rel (%p256) target = $region44
        $region43: #{discriminator_forward.1} parent=39 // pred_region
          %s259 = sand.u32 %s31, 1
          %s260 = scalar_lea.sflag [#allocation4], %s259
          %s261 = sand.u32 %s31, 1
          %s262 = smul.addr %s261, 1024
          %s263 = scalar_lea.vmem [#allocation3], %s262
          %s264 = smul.u32 32, %s21
          %s266 = ssub.s32 16384, 16384
          %267 = vsyncadd %s260, %s266
          %s268 = smul.addr %s264, 4
          %s269 = smul.addr %s268, 128
          %s270 = scalar_lea.hbm %s0, %s269
          %s271 = sshll.u32 %s263, 4
          %s272 = int_to_ptr.vmem [resolvable:$true] %s271
          %277 = dma.hbm_to_vmem [thread:$0]  %s270, 16384, %s272, %s260, 512, 512, 32
        $region44: #{discriminator_forward.1} parent=39 // pred_fallthru
          _
      $region40: #{discriminator_forward.1} parent=5 // pred_fallthru
        _
      %p278 = scmp.le.s32.totalorder 1, %s21
      %p279 = scmp.lt.s32.totalorder %s21, 3
      %p280 = pnand %p278, %p279
      %p281 = pneg %p280
      // Predicated region
      $region45: #{discriminator_forward.1} parent=5 // pred_check
        _
      $region46: #{discriminator_forward.1} parent=5 // pred_check_branch
        %283 = sbr.rel (%p280) target = $region48
      $region47: #{discriminator_forward.1} parent=5 // pred_region
        %s284 = ssub.s32 %s21, 1
        %s285 = sand.u32 %s34, 1
        %s286 = scalar_lea.sflag [#allocation4], %s285
        %s287 = sand.u32 %s34, 1
        %s288 = smul.addr %s287, 1024
        %s289 = scalar_lea.vmem [#allocation3], %s288
        // Predicated region
        $region49: #{discriminator_forward.1} parent=47 // pred_check
          %p290 = pneg %p47
        $region50: #{discriminator_forward.1} parent=47 // pred_check_branch
          %292 = sbr.rel (%p290) target = $region52
        $region51: #{discriminator_forward.1} parent=47 // pred_region
          %293 = dma.done %s286, 16384
        $region52: #{discriminator_forward.1} parent=47 // pred_fallthru
          _
        // Predicated region
        $region53: #{discriminator_forward.1} parent=47 // pred_check
          %p294 = pneg %p68
        $region54: #{discriminator_forward.1} parent=47 // pred_check_branch
          %296 = sbr.rel (%p294) target = $region56
        $region55: #{discriminator_forward.1} parent=47 // pred_region
          %297 = dma.done [#allocation7], 8192
        $region56: #{discriminator_forward.1} parent=47 // pred_fallthru
          _
        // Predicated region
        $region57: #{discriminator_forward.1} parent=47 // pred_check
          %p298 = pneg %p110
        $region58: #{discriminator_forward.1} parent=47 // pred_check_branch
          %300 = sbr.rel (%p298) target = $region60
        $region59: #{discriminator_forward.1} parent=47 // pred_region
          %301 = dma.done [#allocation7], 2048
        $region60: #{discriminator_forward.1} parent=47 // pred_fallthru
          _
        %s302 = sand.u32 %s34, 1
        %s303 = scalar_lea.sflag [#allocation4], %s302
        %s304 = sand.u32 %s34, 1
        %s305 = smul.addr %s304, 1024
        %s306 = scalar_lea.vmem [#allocation3], %s305
        %p307 = pneg %p47
        %p308 = pneg %p44
        %p309 = pneg %p68
        %p310 = pneg %p65
        %p311 = pneg %p89
        %p312 = pneg %p86
        %p313 = pneg %p110
        %p314 = pneg %p107
        %p315 = pneg %p131
        %p316 = pneg %p128
        %p317 = pneg %p152
        %p318 = pneg %p149
        %p319 = pneg %p173
        %p320 = pneg %p170
        %p321 = pneg %p199
        %p322 = pneg %p196
        %s323 = sand.u32 %s186, 1
        %s324 = scalar_lea.sflag [#allocation5], %s323
        %s325 = sand.u32 %s186, 1
        %s326 = smul.addr %s325, 2
        %s327 = scalar_lea.vmem [#allocation9], %s326
        %s328 = smul.u32 32, %s26
        %s329 = smul.u32 2, %s26
        %v331 = vld [vmem:[%s289] sm:$0xff]
        %v332 = vld [vmem:[%s289 + $0x8] sm:$0xff]
        %v333 = vld [vmem:[%s289 + $0x10] sm:$0xff]
        %v334 = vld [vmem:[%s289 + $0x18] sm:$0xff]
        %v335 = vld [vmem:[%s289 + $0x20] sm:$0xff]
        %v336 = vld [vmem:[%s289 + $0x28] sm:$0xff]
        %v337 = vld [vmem:[%s289 + $0x30] sm:$0xff]
        %v338 = vld [vmem:[%s289 + $0x38] sm:$0xff]
        %v339 = vld [vmem:[%s289 + $0x40] sm:$0xff]
        %v340 = vld [vmem:[%s289 + $0x48] sm:$0xff]
        %v341 = vld [vmem:[%s289 + $0x50] sm:$0xff]
        %v342 = vld [vmem:[%s289 + $0x58] sm:$0xff]
        %v343 = vld [vmem:[%s289 + $0x60] sm:$0xff]
        %v344 = vld [vmem:[%s289 + $0x68] sm:$0xff]
        %v345 = vld [vmem:[%s289 + $0x70] sm:$0xff]
        %v346 = vld [vmem:[%s289 + $0x78] sm:$0xff]
        %v347 = vld [vmem:[%s289 + $0x80] sm:$0xff]
        %v348 = vld [vmem:[%s289 + $0x88] sm:$0xff]
        %v349 = vld [vmem:[%s289 + $0x90] sm:$0xff]
        %v350 = vld [vmem:[%s289 + $0x98] sm:$0xff]
        %v351 = vld [vmem:[%s289 + $0xa0] sm:$0xff]
        %v352 = vld [vmem:[%s289 + $0xa8] sm:$0xff]
        %v353 = vld [vmem:[%s289 + $0xb0] sm:$0xff]
        %v354 = vld [vmem:[%s289 + $0xb8] sm:$0xff]
        %v355 = vld [vmem:[%s289 + $0xc0] sm:$0xff]
        %v356 = vld [vmem:[%s289 + $0xc8] sm:$0xff]
        %v357 = vld [vmem:[%s289 + $0xd0] sm:$0xff]
        %v358 = vld [vmem:[%s289 + $0xd8] sm:$0xff]
        %v359 = vld [vmem:[%s289 + $0xe0] sm:$0xff]
        %v360 = vld [vmem:[%s289 + $0xe8] sm:$0xff]
        %v361 = vld [vmem:[%s289 + $0xf0] sm:$0xff]
        %v362 = vld [vmem:[%s289 + $0xf8] sm:$0xff]
        %v363 = vld [vmem:[%s289 + $0x100] sm:$0xff]
        %v364 = vld [vmem:[%s289 + $0x108] sm:$0xff]
        %v365 = vld [vmem:[%s289 + $0x110] sm:$0xff]
        %v366 = vld [vmem:[%s289 + $0x118] sm:$0xff]
        %v367 = vld [vmem:[%s289 + $0x120] sm:$0xff]
        %v368 = vld [vmem:[%s289 + $0x128] sm:$0xff]
        %v369 = vld [vmem:[%s289 + $0x130] sm:$0xff]
        %v370 = vld [vmem:[%s289 + $0x138] sm:$0xff]
        %v371 = vld [vmem:[%s289 + $0x140] sm:$0xff]
        %v372 = vld [vmem:[%s289 + $0x148] sm:$0xff]
        %v373 = vld [vmem:[%s289 + $0x150] sm:$0xff]
        %v374 = vld [vmem:[%s289 + $0x158] sm:$0xff]
        %v375 = vld [vmem:[%s289 + $0x160] sm:$0xff]
        %v376 = vld [vmem:[%s289 + $0x168] sm:$0xff]
        %v377 = vld [vmem:[%s289 + $0x170] sm:$0xff]
        %v378 = vld [vmem:[%s289 + $0x178] sm:$0xff]
        %v379 = vld [vmem:[%s289 + $0x180] sm:$0xff]
        %v380 = vld [vmem:[%s289 + $0x188] sm:$0xff]
        %v381 = vld [vmem:[%s289 + $0x190] sm:$0xff]
        %v382 = vld [vmem:[%s289 + $0x198] sm:$0xff]
        %v383 = vld [vmem:[%s289 + $0x1a0] sm:$0xff]
        %v384 = vld [vmem:[%s289 + $0x1a8] sm:$0xff]
        %v385 = vld [vmem:[%s289 + $0x1b0] sm:$0xff]
        %v386 = vld [vmem:[%s289 + $0x1b8] sm:$0xff]
        %v387 = vld [vmem:[%s289 + $0x1c0] sm:$0xff]
        %v388 = vld [vmem:[%s289 + $0x1c8] sm:$0xff]
        %v389 = vld [vmem:[%s289 + $0x1d0] sm:$0xff]
        %v390 = vld [vmem:[%s289 + $0x1d8] sm:$0xff]
        %v391 = vld [vmem:[%s289 + $0x1e0] sm:$0xff]
        %v392 = vld [vmem:[%s289 + $0x1e8] sm:$0xff]
        %v393 = vld [vmem:[%s289 + $0x1f0] sm:$0xff]
        %v394 = vld [vmem:[%s289 + $0x1f8] sm:$0xff]
        %v395 = vld [vmem:[%s289 + $0x200] sm:$0xff]
        %v396 = vld [vmem:[%s289 + $0x208] sm:$0xff]
        %v397 = vld [vmem:[%s289 + $0x210] sm:$0xff]
        %v398 = vld [vmem:[%s289 + $0x218] sm:$0xff]
        %v399 = vld [vmem:[%s289 + $0x220] sm:$0xff]
        %v400 = vld [vmem:[%s289 + $0x228] sm:$0xff]
        %v401 = vld [vmem:[%s289 + $0x230] sm:$0xff]
        %v402 = vld [vmem:[%s289 + $0x238] sm:$0xff]
        %v403 = vld [vmem:[%s289 + $0x240] sm:$0xff]
        %v404 = vld [vmem:[%s289 + $0x248] sm:$0xff]
        %v405 = vld [vmem:[%s289 + $0x250] sm:$0xff]
        %v406 = vld [vmem:[%s289 + $0x258] sm:$0xff]
        %v407 = vld [vmem:[%s289 + $0x260] sm:$0xff]
        %v408 = vld [vmem:[%s289 + $0x268] sm:$0xff]
        %v409 = vld [vmem:[%s289 + $0x270] sm:$0xff]
        %v410 = vld [vmem:[%s289 + $0x278] sm:$0xff]
        %v411 = vld [vmem:[%s289 + $0x280] sm:$0xff]
        %v412 = vld [vmem:[%s289 + $0x288] sm:$0xff]
        %v413 = vld [vmem:[%s289 + $0x290] sm:$0xff]
        %v414 = vld [vmem:[%s289 + $0x298] sm:$0xff]
        %v415 = vld [vmem:[%s289 + $0x2a0] sm:$0xff]
        %v416 = vld [vmem:[%s289 + $0x2a8] sm:$0xff]
        %v417 = vld [vmem:[%s289 + $0x2b0] sm:$0xff]
        %v418 = vld [vmem:[%s289 + $0x2b8] sm:$0xff]
        %v419 = vld [vmem:[%s289 + $0x2c0] sm:$0xff]
        %v420 = vld [vmem:[%s289 + $0x2c8] sm:$0xff]
        %v421 = vld [vmem:[%s289 + $0x2d0] sm:$0xff]
        %v422 = vld [vmem:[%s289 + $0x2d8] sm:$0xff]
        %v423 = vld [vmem:[%s289 + $0x2e0] sm:$0xff]
        %v424 = vld [vmem:[%s289 + $0x2e8] sm:$0xff]
        %v425 = vld [vmem:[%s289 + $0x2f0] sm:$0xff]
        %v426 = vld [vmem:[%s289 + $0x2f8] sm:$0xff]
        %v427 = vld [vmem:[%s289 + $0x300] sm:$0xff]
        %v428 = vld [vmem:[%s289 + $0x308] sm:$0xff]
        %v429 = vld [vmem:[%s289 + $0x310] sm:$0xff]
        %v430 = vld [vmem:[%s289 + $0x318] sm:$0xff]
        %v431 = vld [vmem:[%s289 + $0x320] sm:$0xff]
        %v432 = vld [vmem:[%s289 + $0x328] sm:$0xff]
        %v433 = vld [vmem:[%s289 + $0x330] sm:$0xff]
        %v434 = vld [vmem:[%s289 + $0x338] sm:$0xff]
        %v435 = vld [vmem:[%s289 + $0x340] sm:$0xff]
        %v436 = vld [vmem:[%s289 + $0x348] sm:$0xff]
        %v437 = vld [vmem:[%s289 + $0x350] sm:$0xff]
        %v438 = vld [vmem:[%s289 + $0x358] sm:$0xff]
        %v439 = vld [vmem:[%s289 + $0x360] sm:$0xff]
        %v440 = vld [vmem:[%s289 + $0x368] sm:$0xff]
        %v441 = vld [vmem:[%s289 + $0x370] sm:$0xff]
        %v442 = vld [vmem:[%s289 + $0x378] sm:$0xff]
        %v443 = vld [vmem:[%s289 + $0x380] sm:$0xff]
        %v444 = vld [vmem:[%s289 + $0x388] sm:$0xff]
        %v445 = vld [vmem:[%s289 + $0x390] sm:$0xff]
        %v446 = vld [vmem:[%s289 + $0x398] sm:$0xff]
        %v447 = vld [vmem:[%s289 + $0x3a0] sm:$0xff]
        %v448 = vld [vmem:[%s289 + $0x3a8] sm:$0xff]
        %v449 = vld [vmem:[%s289 + $0x3b0] sm:$0xff]
        %v450 = vld [vmem:[%s289 + $0x3b8] sm:$0xff]
        %v451 = vld [vmem:[%s289 + $0x3c0] sm:$0xff]
        %v452 = vld [vmem:[%s289 + $0x3c8] sm:$0xff]
        %v453 = vld [vmem:[%s289 + $0x3d0] sm:$0xff]
        %v454 = vld [vmem:[%s289 + $0x3d8] sm:$0xff]
        %v455 = vld [vmem:[%s289 + $0x3e0] sm:$0xff]
        %v456 = vld [vmem:[%s289 + $0x3e8] sm:$0xff]
        %v457 = vld [vmem:[%s289 + $0x3f0] sm:$0xff]
        %v458 = vld [vmem:[%s289 + $0x3f8] sm:$0xff]
        %v459 = vpack.c.bf16 %v335, %v331
        %v460 = vpack.c.bf16 %v336, %v332
        %v461 = vpack.c.bf16 %v337, %v333
        %v462 = vpack.c.bf16 %v338, %v334
        %v463 = vpack.c.bf16 %v343, %v339
        %v464 = vpack.c.bf16 %v344, %v340
        %v465 = vpack.c.bf16 %v345, %v341
        %v466 = vpack.c.bf16 %v346, %v342
        %v467 = vpack.c.bf16 %v351, %v347
        %v468 = vpack.c.bf16 %v352, %v348
        %v469 = vpack.c.bf16 %v353, %v349
        %v470 = vpack.c.bf16 %v354, %v350
        %v471 = vpack.c.bf16 %v359, %v355
        %v472 = vpack.c.bf16 %v360, %v356
        %v473 = vpack.c.bf16 %v361, %v357
        %v474 = vpack.c.bf16 %v362, %v358
        %v475 = vpack.c.bf16 %v367, %v363
        %v476 = vpack.c.bf16 %v368, %v364
        %v477 = vpack.c.bf16 %v369, %v365
        %v478 = vpack.c.bf16 %v370, %v366
        %v479 = vpack.c.bf16 %v375, %v371
        %v480 = vpack.c.bf16 %v376, %v372
        %v481 = vpack.c.bf16 %v377, %v373
        %v482 = vpack.c.bf16 %v378, %v374
        %v483 = vpack.c.bf16 %v383, %v379
        %v484 = vpack.c.bf16 %v384, %v380
        %v485 = vpack.c.bf16 %v385, %v381
        %v486 = vpack.c.bf16 %v386, %v382
        %v487 = vpack.c.bf16 %v391, %v387
        %v488 = vpack.c.bf16 %v392, %v388
        %v489 = vpack.c.bf16 %v393, %v389
        %v490 = vpack.c.bf16 %v394, %v390
        %v491 = vpack.c.bf16 %v399, %v395
        %v492 = vpack.c.bf16 %v400, %v396
        %v493 = vpack.c.bf16 %v401, %v397
        %v494 = vpack.c.bf16 %v402, %v398
        %v495 = vpack.c.bf16 %v407, %v403
        %v496 = vpack.c.bf16 %v408, %v404
        %v497 = vpack.c.bf16 %v409, %v405
        %v498 = vpack.c.bf16 %v410, %v406
        %v499 = vpack.c.bf16 %v415, %v411
        %v500 = vpack.c.bf16 %v416, %v412
        %v501 = vpack.c.bf16 %v417, %v413
        %v502 = vpack.c.bf16 %v418, %v414
        %v503 = vpack.c.bf16 %v423, %v419
        %v504 = vpack.c.bf16 %v424, %v420
        %v505 = vpack.c.bf16 %v425, %v421
        %v506 = vpack.c.bf16 %v426, %v422
        %v507 = vpack.c.bf16 %v431, %v427
        %v508 = vpack.c.bf16 %v432, %v428
        %v509 = vpack.c.bf16 %v433, %v429
        %v510 = vpack.c.bf16 %v434, %v430
        %v511 = vpack.c.bf16 %v439, %v435
        %v512 = vpack.c.bf16 %v440, %v436
        %v513 = vpack.c.bf16 %v441, %v437
        %v514 = vpack.c.bf16 %v442, %v438
        %v515 = vpack.c.bf16 %v447, %v443
        %v516 = vpack.c.bf16 %v448, %v444
        %v517 = vpack.c.bf16 %v449, %v445
        %v518 = vpack.c.bf16 %v450, %v446
        %v519 = vpack.c.bf16 %v455, %v451
        %v520 = vpack.c.bf16 %v456, %v452
        %v521 = vpack.c.bf16 %v457, %v453
        %v522 = vpack.c.bf16 %v458, %v454
        %v523 = vld [vmem:[#allocation6] sm:$0xff]
        %v524 = vld [vmem:[#allocation6 + $0x8] sm:$0xff]
        %v525 = vld [vmem:[#allocation6 + $0x10] sm:$0xff]
        %v526 = vld [vmem:[#allocation6 + $0x18] sm:$0xff]
        %v527 = vld [vmem:[#allocation6 + $0x20] sm:$0xff]
        %v528 = vld [vmem:[#allocation6 + $0x28] sm:$0xff]
        %v529 = vld [vmem:[#allocation6 + $0x30] sm:$0xff]
        %v530 = vld [vmem:[#allocation6 + $0x38] sm:$0xff]
        %v531 = vld [vmem:[#allocation6 + $0x40] sm:$0xff]
        %v532 = vld [vmem:[#allocation6 + $0x48] sm:$0xff]
        %v533 = vld [vmem:[#allocation6 + $0x50] sm:$0xff]
        %v534 = vld [vmem:[#allocation6 + $0x58] sm:$0xff]
        %v535 = vld [vmem:[#allocation6 + $0x60] sm:$0xff]
        %v536 = vld [vmem:[#allocation6 + $0x68] sm:$0xff]
        %v537 = vld [vmem:[#allocation6 + $0x70] sm:$0xff]
        %v538 = vld [vmem:[#allocation6 + $0x78] sm:$0xff]
        %v539 = vld [vmem:[#allocation6 + $0x80] sm:$0xff]
        %v540 = vld [vmem:[#allocation6 + $0x88] sm:$0xff]
        %v541 = vld [vmem:[#allocation6 + $0x90] sm:$0xff]
        %v542 = vld [vmem:[#allocation6 + $0x98] sm:$0xff]
        %v543 = vld [vmem:[#allocation6 + $0xa0] sm:$0xff]
        %v544 = vld [vmem:[#allocation6 + $0xa8] sm:$0xff]
        %v545 = vld [vmem:[#allocation6 + $0xb0] sm:$0xff]
        %v546 = vld [vmem:[#allocation6 + $0xb8] sm:$0xff]
        %v547 = vld [vmem:[#allocation6 + $0xc0] sm:$0xff]
        %v548 = vld [vmem:[#allocation6 + $0xc8] sm:$0xff]
        %v549 = vld [vmem:[#allocation6 + $0xd0] sm:$0xff]
        %v550 = vld [vmem:[#allocation6 + $0xd8] sm:$0xff]
        %v551 = vld [vmem:[#allocation6 + $0xe0] sm:$0xff]
        %v552 = vld [vmem:[#allocation6 + $0xe8] sm:$0xff]
        %v553 = vld [vmem:[#allocation6 + $0xf0] sm:$0xff]
        %v554 = vld [vmem:[#allocation6 + $0xf8] sm:$0xff]
        %v555 = vld [vmem:[#allocation6 + $0x100] sm:$0xff]
        %v556 = vld [vmem:[#allocation6 + $0x108] sm:$0xff]
        %v557 = vld [vmem:[#allocation6 + $0x110] sm:$0xff]
        %v558 = vld [vmem:[#allocation6 + $0x118] sm:$0xff]
        %v559 = vld [vmem:[#allocation6 + $0x120] sm:$0xff]
        %v560 = vld [vmem:[#allocation6 + $0x128] sm:$0xff]
        %v561 = vld [vmem:[#allocation6 + $0x130] sm:$0xff]
        %v562 = vld [vmem:[#allocation6 + $0x138] sm:$0xff]
        %v563 = vld [vmem:[#allocation6 + $0x140] sm:$0xff]
        %v564 = vld [vmem:[#allocation6 + $0x148] sm:$0xff]
        %v565 = vld [vmem:[#allocation6 + $0x150] sm:$0xff]
        %v566 = vld [vmem:[#allocation6 + $0x158] sm:$0xff]
        %v567 = vld [vmem:[#allocation6 + $0x160] sm:$0xff]
        %v568 = vld [vmem:[#allocation6 + $0x168] sm:$0xff]
        %v569 = vld [vmem:[#allocation6 + $0x170] sm:$0xff]
        %v570 = vld [vmem:[#allocation6 + $0x178] sm:$0xff]
        %v571 = vld [vmem:[#allocation6 + $0x180] sm:$0xff]
        %v572 = vld [vmem:[#allocation6 + $0x188] sm:$0xff]
        %v573 = vld [vmem:[#allocation6 + $0x190] sm:$0xff]
        %v574 = vld [vmem:[#allocation6 + $0x198] sm:$0xff]
        %v575 = vld [vmem:[#allocation6 + $0x1a0] sm:$0xff]
        %v576 = vld [vmem:[#allocation6 + $0x1a8] sm:$0xff]
        %v577 = vld [vmem:[#allocation6 + $0x1b0] sm:$0xff]
        %v578 = vld [vmem:[#allocation6 + $0x1b8] sm:$0xff]
        %v579 = vld [vmem:[#allocation6 + $0x1c0] sm:$0xff]
        %v580 = vld [vmem:[#allocation6 + $0x1c8] sm:$0xff]
        %v581 = vld [vmem:[#allocation6 + $0x1d0] sm:$0xff]
        %v582 = vld [vmem:[#allocation6 + $0x1d8] sm:$0xff]
        %v583 = vld [vmem:[#allocation6 + $0x1e0] sm:$0xff]
        %v584 = vld [vmem:[#allocation6 + $0x1e8] sm:$0xff]
        %v585 = vld [vmem:[#allocation6 + $0x1f0] sm:$0xff]
        %v586 = vld [vmem:[#allocation6 + $0x1f8] sm:$0xff]
        %v587 = vld [vmem:[%s2] sm:$0x3]
        %v589 = vlaneseq
        %v590 = vshrl.u32 %v589, 7
        %v591 = vsub.s32 0, %v590
        %v592 = vrot.slane %v587, %v591
        %v593 = vlaneseq
        %v594 = vshrl.u32 %v593, 7
        %v595 = vsub.s32 1, %v594
        %v596 = vrot.slane %v587, %v595
        %v663 = vunpack.c.l.b16 %v523
        %v664 = vunpack.c.h.b16 %v523
        %v665 = vunpack.c.l.b16 %v524
        %v666 = vunpack.c.h.b16 %v524
        %v667 = vunpack.c.l.b16 %v525
        %v668 = vunpack.c.h.b16 %v525
        %v669 = vunpack.c.l.b16 %v526
        %v670 = vunpack.c.h.b16 %v526
        %v671 = vunpack.c.l.b16 %v527
        %v672 = vunpack.c.h.b16 %v527
        %v673 = vunpack.c.l.b16 %v528
        %v674 = vunpack.c.h.b16 %v528
        %v675 = vunpack.c.l.b16 %v529
        %v676 = vunpack.c.h.b16 %v529
        %v677 = vunpack.c.l.b16 %v530
        %v678 = vunpack.c.h.b16 %v530
        %v679 = vunpack.c.l.b16 %v531
        %v680 = vunpack.c.h.b16 %v531
        %v681 = vunpack.c.l.b16 %v532
        %v682 = vunpack.c.h.b16 %v532
        %v683 = vunpack.c.l.b16 %v533
        %v684 = vunpack.c.h.b16 %v533
        %v685 = vunpack.c.l.b16 %v534
        %v686 = vunpack.c.h.b16 %v534
        %v687 = vunpack.c.l.b16 %v535
        %v688 = vunpack.c.h.b16 %v535
        %v689 = vunpack.c.l.b16 %v536
        %v690 = vunpack.c.h.b16 %v536
        %v691 = vunpack.c.l.b16 %v537
        %v692 = vunpack.c.h.b16 %v537
        %v693 = vunpack.c.l.b16 %v538
        %v694 = vunpack.c.h.b16 %v538
        %v695 = vunpack.c.l.b16 %v539
        %v696 = vunpack.c.h.b16 %v539
        %v697 = vunpack.c.l.b16 %v540
        %v698 = vunpack.c.h.b16 %v540
        %v699 = vunpack.c.l.b16 %v541
        %v700 = vunpack.c.h.b16 %v541
        %v701 = vunpack.c.l.b16 %v542
        %v702 = vunpack.c.h.b16 %v542
        %v703 = vunpack.c.l.b16 %v543
        %v704 = vunpack.c.h.b16 %v543
        %v705 = vunpack.c.l.b16 %v544
        %v706 = vunpack.c.h.b16 %v544
        %v707 = vunpack.c.l.b16 %v545
        %v708 = vunpack.c.h.b16 %v545
        %v709 = vunpack.c.l.b16 %v546
        %v710 = vunpack.c.h.b16 %v546
        %v711 = vunpack.c.l.b16 %v547
        %v712 = vunpack.c.h.b16 %v547
        %v713 = vunpack.c.l.b16 %v548
        %v714 = vunpack.c.h.b16 %v548
        %v715 = vunpack.c.l.b16 %v549
        %v716 = vunpack.c.h.b16 %v549
        %v717 = vunpack.c.l.b16 %v550
        %v718 = vunpack.c.h.b16 %v550
        %v719 = vunpack.c.l.b16 %v551
        %v720 = vunpack.c.h.b16 %v551
        %v721 = vunpack.c.l.b16 %v552
        %v722 = vunpack.c.h.b16 %v552
        %v723 = vunpack.c.l.b16 %v553
        %v724 = vunpack.c.h.b16 %v553
        %v725 = vunpack.c.l.b16 %v554
        %v726 = vunpack.c.h.b16 %v554
        %v727 = vunpack.c.l.b16 %v555
        %v728 = vunpack.c.h.b16 %v555
        %v729 = vunpack.c.l.b16 %v556
        %v730 = vunpack.c.h.b16 %v556
        %v731 = vunpack.c.l.b16 %v557
        %v732 = vunpack.c.h.b16 %v557
        %v733 = vunpack.c.l.b16 %v558
        %v734 = vunpack.c.h.b16 %v558
        %v735 = vunpack.c.l.b16 %v559
        %v736 = vunpack.c.h.b16 %v559
        %v737 = vunpack.c.l.b16 %v560
        %v738 = vunpack.c.h.b16 %v560
        %v739 = vunpack.c.l.b16 %v561
        %v740 = vunpack.c.h.b16 %v561
        %v741 = vunpack.c.l.b16 %v562
        %v742 = vunpack.c.h.b16 %v562
        %v743 = vunpack.c.l.b16 %v563
        %v744 = vunpack.c.h.b16 %v563
        %v745 = vunpack.c.l.b16 %v564
        %v746 = vunpack.c.h.b16 %v564
        %v747 = vunpack.c.l.b16 %v565
        %v748 = vunpack.c.h.b16 %v565
        %v749 = vunpack.c.l.b16 %v566
        %v750 = vunpack.c.h.b16 %v566
        %v751 = vunpack.c.l.b16 %v567
        %v752 = vunpack.c.h.b16 %v567
        %v753 = vunpack.c.l.b16 %v568
        %v754 = vunpack.c.h.b16 %v568
        %v755 = vunpack.c.l.b16 %v569
        %v756 = vunpack.c.h.b16 %v569
        %v757 = vunpack.c.l.b16 %v570
        %v758 = vunpack.c.h.b16 %v570
        %v759 = vunpack.c.l.b16 %v571
        %v760 = vunpack.c.h.b16 %v571
        %v761 = vunpack.c.l.b16 %v572
        %v762 = vunpack.c.h.b16 %v572
        %v763 = vunpack.c.l.b16 %v573
        %v764 = vunpack.c.h.b16 %v573
        %v765 = vunpack.c.l.b16 %v574
        %v766 = vunpack.c.h.b16 %v574
        %v767 = vunpack.c.l.b16 %v575
        %v768 = vunpack.c.h.b16 %v575
        %v769 = vunpack.c.l.b16 %v576
        %v770 = vunpack.c.h.b16 %v576
        %v771 = vunpack.c.l.b16 %v577
        %v772 = vunpack.c.h.b16 %v577
        %v773 = vunpack.c.l.b16 %v578
        %v774 = vunpack.c.h.b16 %v578
        %v775 = vunpack.c.l.b16 %v579
        %v776 = vunpack.c.h.b16 %v579
        %v777 = vunpack.c.l.b16 %v580
        %v778 = vunpack.c.h.b16 %v580
        %v779 = vunpack.c.l.b16 %v581
        %v780 = vunpack.c.h.b16 %v581
        %v781 = vunpack.c.l.b16 %v582
        %v782 = vunpack.c.h.b16 %v582
        %v783 = vunpack.c.l.b16 %v583
        %v784 = vunpack.c.h.b16 %v583
        %v785 = vunpack.c.l.b16 %v584
        %v786 = vunpack.c.h.b16 %v584
        %v787 = vunpack.c.l.b16 %v585
        %v788 = vunpack.c.h.b16 %v585
        %v789 = vunpack.c.l.b16 %v586
        %v790 = vunpack.c.h.b16 %v586
        %v791 = vpack.c.b16 %v665, %v663
        %v792 = vpack.c.b16 %v666, %v664
        %v793 = vpack.c.b16 %v669, %v667
        %v794 = vpack.c.b16 %v670, %v668
        %v795 = vpack.c.b16 %v673, %v671
        %v796 = vpack.c.b16 %v674, %v672
        %v797 = vpack.c.b16 %v677, %v675
        %v798 = vpack.c.b16 %v678, %v676
        %v799 = vpack.c.b16 %v681, %v679
        %v800 = vpack.c.b16 %v682, %v680
        %v801 = vpack.c.b16 %v685, %v683
        %v802 = vpack.c.b16 %v686, %v684
        %v803 = vpack.c.b16 %v689, %v687
        %v804 = vpack.c.b16 %v690, %v688
        %v805 = vpack.c.b16 %v693, %v691
        %v806 = vpack.c.b16 %v694, %v692
        %v807 = vpack.c.b16 %v697, %v695
        %v808 = vpack.c.b16 %v698, %v696
        %v809 = vpack.c.b16 %v701, %v699
        %v810 = vpack.c.b16 %v702, %v700
        %v811 = vpack.c.b16 %v705, %v703
        %v812 = vpack.c.b16 %v706, %v704
        %v813 = vpack.c.b16 %v709, %v707
        %v814 = vpack.c.b16 %v710, %v708
        %v815 = vpack.c.b16 %v713, %v711
        %v816 = vpack.c.b16 %v714, %v712
        %v817 = vpack.c.b16 %v717, %v715
        %v818 = vpack.c.b16 %v718, %v716
        %v819 = vpack.c.b16 %v721, %v719
        %v820 = vpack.c.b16 %v722, %v720
        %v821 = vpack.c.b16 %v725, %v723
        %v822 = vpack.c.b16 %v726, %v724
        %v823 = vpack.c.b16 %v729, %v727
        %v824 = vpack.c.b16 %v730, %v728
        %v825 = vpack.c.b16 %v733, %v731
        %v826 = vpack.c.b16 %v734, %v732
        %v827 = vpack.c.b16 %v737, %v735
        %v828 = vpack.c.b16 %v738, %v736
        %v829 = vpack.c.b16 %v741, %v739
        %v830 = vpack.c.b16 %v742, %v740
        %v831 = vpack.c.b16 %v745, %v743
        %v832 = vpack.c.b16 %v746, %v744
        %v833 = vpack.c.b16 %v749, %v747
        %v834 = vpack.c.b16 %v750, %v748
        %v835 = vpack.c.b16 %v753, %v751
        %v836 = vpack.c.b16 %v754, %v752
        %v837 = vpack.c.b16 %v757, %v755
        %v838 = vpack.c.b16 %v758, %v756
        %v839 = vpack.c.b16 %v761, %v759
        %v840 = vpack.c.b16 %v762, %v760
        %v841 = vpack.c.b16 %v765, %v763
        %v842 = vpack.c.b16 %v766, %v764
        %v843 = vpack.c.b16 %v769, %v767
        %v844 = vpack.c.b16 %v770, %v768
        %v845 = vpack.c.b16 %v773, %v771
        %v846 = vpack.c.b16 %v774, %v772
        %v847 = vpack.c.b16 %v777, %v775
        %v848 = vpack.c.b16 %v778, %v776
        %v849 = vpack.c.b16 %v781, %v779
        %v850 = vpack.c.b16 %v782, %v780
        %v851 = vpack.c.b16 %v785, %v783
        %v852 = vpack.c.b16 %v786, %v784
        %v853 = vpack.c.b16 %v789, %v787
        %v854 = vpack.c.b16 %v790, %v788
        %919 = vmatprep.subr.bf16.mxu0 %v806
        %920 = vmatpush1.bf16.msra.mxu0 %v805
        %921 = vmatprep.subr.bf16.mxu0 %v804
        %922 = vmatpush1.bf16.msra.mxu0 %v803
        %923 = vmatprep.subr.bf16.mxu0 %v802
        %924 = vmatpush1.bf16.msra.mxu0 %v801
        %925 = vmatprep.subr.bf16.mxu0 %v800
        %926 = vmatpush1.bf16.msra.mxu0 %v799
        %927 = vmatprep.subr.bf16.mxu0 %v798
        %928 = vmatpush1.bf16.msra.mxu0 %v797
        %929 = vmatprep.subr.bf16.mxu0 %v796
        %930 = vmatpush1.bf16.msra.mxu0 %v795
        %931 = vmatprep.subr.bf16.mxu0 %v794
        %932 = vmatpush1.bf16.msra.mxu0 %v793
        %933 = vmatprep.subr.bf16.mxu0 %v792
        %934 = vmatpush1.bf16.msra.mxu0 %v791
        %935 = vmatprep.subr.bf16.mxu0 %v822
        %936 = vmatpush2.bf16.msra.mxu0 %v821
        %937 = vmatprep.subr.bf16.mxu0 %v820
        %938 = vmatpush2.bf16.msra.mxu0 %v819
        %939 = vmatprep.subr.bf16.mxu0 %v818
        %940 = vmatpush2.bf16.msra.mxu0 %v817
        %941 = vmatprep.subr.bf16.mxu0 %v816
        %942 = vmatpush2.bf16.msra.mxu0 %v815
        %943 = vmatprep.subr.bf16.mxu0 %v814
        %944 = vmatpush2.bf16.msra.mxu0 %v813
        %945 = vmatprep.subr.bf16.mxu0 %v812
        %946 = vmatpush2.bf16.msra.mxu0 %v811
        %947 = vmatprep.subr.bf16.mxu0 %v810
        %948 = vmatpush2.bf16.msra.mxu0 %v809
        %949 = vmatprep.subr.bf16.mxu0 %v808
        %950 = vmatpush2.bf16.msra.mxu0 %v807
        %951 = vmatprep.mubr.bf16.mxu0 %v460
        %952 = vmatmul.mubr.bf16.gmra.mxu0 %v459
        %v953 = vpop.f32.mrf.mxu0
        %v954 = vadd.f32 %v592, %v953
        %v955 = vpop.f32.mrf.mxu0
        %v956 = vadd.f32 %v596, %v955
        %v957 = vpop.f32.mrf.mxu0
        %v958 = vadd.f32 %v592, %v957
        %v959 = vpop.f32.mrf.mxu0
        %v960 = vadd.f32 %v596, %v959
        %961 = vmatprep.mubr.bf16.mxu0 %v464
        %962 = vmatmul.mubr.bf16.gmra.mxu0 %v463
        %v963 = vpop.f32.mrf.mxu0
        %v964 = vadd.f32 %v592, %v963
        %v965 = vpop.f32.mrf.mxu0
        %v966 = vadd.f32 %v596, %v965
        %v967 = vpop.f32.mrf.mxu0
        %v968 = vadd.f32 %v592, %v967
        %v969 = vpop.f32.mrf.mxu0
        %v970 = vadd.f32 %v596, %v969
        %971 = vmatprep.mubr.bf16.mxu0 %v468
        %972 = vmatmul.mubr.bf16.gmra.mxu0 %v467
        %v973 = vpop.f32.mrf.mxu0
        %v974 = vadd.f32 %v592, %v973
        %v975 = vpop.f32.mrf.mxu0
        %v976 = vadd.f32 %v596, %v975
        %v977 = vpop.f32.mrf.mxu0
        %v978 = vadd.f32 %v592, %v977
        %v979 = vpop.f32.mrf.mxu0
        %v980 = vadd.f32 %v596, %v979
        %981 = vmatprep.mubr.bf16.mxu0 %v472
        %982 = vmatmul.mubr.bf16.gmra.mxu0 %v471
        %v983 = vpop.f32.mrf.mxu0
        %v984 = vadd.f32 %v592, %v983
        %v985 = vpop.f32.mrf.mxu0
        %v986 = vadd.f32 %v596, %v985
        %v987 = vpop.f32.mrf.mxu0
        %v988 = vadd.f32 %v592, %v987
        %v989 = vpop.f32.mrf.mxu0
        %v990 = vadd.f32 %v596, %v989
        %991 = vmatprep.mubr.bf16.mxu0 %v476
        %992 = vmatmul.mubr.bf16.gmra.mxu0 %v475
        %v993 = vpop.f32.mrf.mxu0
        %v994 = vadd.f32 %v592, %v993
        %v995 = vpop.f32.mrf.mxu0
        %v996 = vadd.f32 %v596, %v995
        %v997 = vpop.f32.mrf.mxu0
        %v998 = vadd.f32 %v592, %v997
        %v999 = vpop.f32.mrf.mxu0
        %v1000 = vadd.f32 %v596, %v999
        %1001 = vmatprep.mubr.bf16.mxu0 %v480
        %1002 = vmatmul.mubr.bf16.gmra.mxu0 %v479
        %v1003 = vpop.f32.mrf.mxu0
        %v1004 = vadd.f32 %v592, %v1003
        %v1005 = vpop.f32.mrf.mxu0
        %v1006 = vadd.f32 %v596, %v1005
        %v1007 = vpop.f32.mrf.mxu0
        %v1008 = vadd.f32 %v592, %v1007
        %v1009 = vpop.f32.mrf.mxu0
        %v1010 = vadd.f32 %v596, %v1009
        %1011 = vmatprep.mubr.bf16.mxu0 %v484
        %1012 = vmatmul.mubr.bf16.gmra.mxu0 %v483
        %v1013 = vpop.f32.mrf.mxu0
        %v1014 = vadd.f32 %v592, %v1013
        %v1015 = vpop.f32.mrf.mxu0
        %v1016 = vadd.f32 %v596, %v1015
        %v1017 = vpop.f32.mrf.mxu0
        %v1018 = vadd.f32 %v592, %v1017
        %v1019 = vpop.f32.mrf.mxu0
        %v1020 = vadd.f32 %v596, %v1019
        %1021 = vmatprep.mubr.bf16.mxu0 %v488
        %1022 = vmatmul.mubr.bf16.gmra.mxu0 %v487
        %v1023 = vpop.f32.mrf.mxu0
        %v1024 = vadd.f32 %v592, %v1023
        %v1025 = vpop.f32.mrf.mxu0
        %v1026 = vadd.f32 %v596, %v1025
        %v1027 = vpop.f32.mrf.mxu0
        %v1028 = vadd.f32 %v592, %v1027
        %v1029 = vpop.f32.mrf.mxu0
        %v1030 = vadd.f32 %v596, %v1029
        %1031 = vmatprep.mubr.bf16.mxu0 %v492
        %1032 = vmatmul.mubr.bf16.gmra.mxu0 %v491
        %v1033 = vpop.f32.mrf.mxu0
        %v1034 = vadd.f32 %v592, %v1033
        %v1035 = vpop.f32.mrf.mxu0
        %v1036 = vadd.f32 %v596, %v1035
        %v1037 = vpop.f32.mrf.mxu0
        %v1038 = vadd.f32 %v592, %v1037
        %v1039 = vpop.f32.mrf.mxu0
        %v1040 = vadd.f32 %v596, %v1039
        %1041 = vmatprep.mubr.bf16.mxu0 %v496
        %1042 = vmatmul.mubr.bf16.gmra.mxu0 %v495
        %v1043 = vpop.f32.mrf.mxu0
        %v1044 = vadd.f32 %v592, %v1043
        %v1045 = vpop.f32.mrf.mxu0
        %v1046 = vadd.f32 %v596, %v1045
        %v1047 = vpop.f32.mrf.mxu0
        %v1048 = vadd.f32 %v592, %v1047
        %v1049 = vpop.f32.mrf.mxu0
        %v1050 = vadd.f32 %v596, %v1049
        %1051 = vmatprep.mubr.bf16.mxu0 %v500
        %1052 = vmatmul.mubr.bf16.gmra.mxu0 %v499
        %v1053 = vpop.f32.mrf.mxu0
        %v1054 = vadd.f32 %v592, %v1053
        %v1055 = vpop.f32.mrf.mxu0
        %v1056 = vadd.f32 %v596, %v1055
        %v1057 = vpop.f32.mrf.mxu0
        %v1058 = vadd.f32 %v592, %v1057
        %v1059 = vpop.f32.mrf.mxu0
        %v1060 = vadd.f32 %v596, %v1059
        %1061 = vmatprep.mubr.bf16.mxu0 %v504
        %1062 = vmatmul.mubr.bf16.gmra.mxu0 %v503
        %v1063 = vpop.f32.mrf.mxu0
        %v1064 = vadd.f32 %v592, %v1063
        %v1065 = vpop.f32.mrf.mxu0
        %v1066 = vadd.f32 %v596, %v1065
        %v1067 = vpop.f32.mrf.mxu0
        %v1068 = vadd.f32 %v592, %v1067
        %v1069 = vpop.f32.mrf.mxu0
        %v1070 = vadd.f32 %v596, %v1069
        %1071 = vmatprep.mubr.bf16.mxu0 %v508
        %1072 = vmatmul.mubr.bf16.gmra.mxu0 %v507
        %v1073 = vpop.f32.mrf.mxu0
        %v1074 = vadd.f32 %v592, %v1073
        %v1075 = vpop.f32.mrf.mxu0
        %v1076 = vadd.f32 %v596, %v1075
        %v1077 = vpop.f32.mrf.mxu0
        %v1078 = vadd.f32 %v592, %v1077
        %v1079 = vpop.f32.mrf.mxu0
        %v1080 = vadd.f32 %v596, %v1079
        %1081 = vmatprep.mubr.bf16.mxu0 %v512
        %1082 = vmatmul.mubr.bf16.gmra.mxu0 %v511
        %v1083 = vpop.f32.mrf.mxu0
        %v1084 = vadd.f32 %v592, %v1083
        %v1085 = vpop.f32.mrf.mxu0
        %v1086 = vadd.f32 %v596, %v1085
        %v1087 = vpop.f32.mrf.mxu0
        %v1088 = vadd.f32 %v592, %v1087
        %v1089 = vpop.f32.mrf.mxu0
        %v1090 = vadd.f32 %v596, %v1089
        %1091 = vmatprep.mubr.bf16.mxu0 %v516
        %1092 = vmatmul.mubr.bf16.gmra.mxu0 %v515
        %v1093 = vpop.f32.mrf.mxu0
        %v1094 = vadd.f32 %v592, %v1093
        %v1095 = vpop.f32.mrf.mxu0
        %v1096 = vadd.f32 %v596, %v1095
        %v1097 = vpop.f32.mrf.mxu0
        %v1098 = vadd.f32 %v592, %v1097
        %v1099 = vpop.f32.mrf.mxu0
        %v1100 = vadd.f32 %v596, %v1099
        %1101 = vmatprep.mubr.bf16.mxu0 %v520
        %1102 = vmatmul.mubr.bf16.gmra.mxu0 %v519
        %v1103 = vpop.f32.mrf.mxu0
        %v1104 = vadd.f32 %v592, %v1103
        %v1105 = vpop.f32.mrf.mxu0
        %v1106 = vadd.f32 %v596, %v1105
        %v1107 = vpop.f32.mrf.mxu0
        %v1108 = vadd.f32 %v592, %v1107
        %v1109 = vpop.f32.mrf.mxu0
        %v1110 = vadd.f32 %v596, %v1109
        %1111 = vdwg.mxu0
        %1112 = vmatprep.subr.bf16.mxu0 %v838
        %1113 = vmatpush1.bf16.msra.mxu0 %v837
        %1114 = vmatprep.subr.bf16.mxu0 %v836
        %1115 = vmatpush1.bf16.msra.mxu0 %v835
        %1116 = vmatprep.subr.bf16.mxu0 %v834
        %1117 = vmatpush1.bf16.msra.mxu0 %v833
        %1118 = vmatprep.subr.bf16.mxu0 %v832
        %1119 = vmatpush1.bf16.msra.mxu0 %v831
        %1120 = vmatprep.subr.bf16.mxu0 %v830
        %1121 = vmatpush1.bf16.msra.mxu0 %v829
        %1122 = vmatprep.subr.bf16.mxu0 %v828
        %1123 = vmatpush1.bf16.msra.mxu0 %v827
        %1124 = vmatprep.subr.bf16.mxu0 %v826
        %1125 = vmatpush1.bf16.msra.mxu0 %v825
        %1126 = vmatprep.subr.bf16.mxu0 %v824
        %1127 = vmatpush1.bf16.msra.mxu0 %v823
        %1128 = vmatprep.subr.bf16.mxu0 %v854
        %1129 = vmatpush2.bf16.msra.mxu0 %v853
        %1130 = vmatprep.subr.bf16.mxu0 %v852
        %1131 = vmatpush2.bf16.msra.mxu0 %v851
        %1132 = vmatprep.subr.bf16.mxu0 %v850
        %1133 = vmatpush2.bf16.msra.mxu0 %v849
        %1134 = vmatprep.subr.bf16.mxu0 %v848
        %1135 = vmatpush2.bf16.msra.mxu0 %v847
        %1136 = vmatprep.subr.bf16.mxu0 %v846
        %1137 = vmatpush2.bf16.msra.mxu0 %v845
        %1138 = vmatprep.subr.bf16.mxu0 %v844
        %1139 = vmatpush2.bf16.msra.mxu0 %v843
        %1140 = vmatprep.subr.bf16.mxu0 %v842
        %1141 = vmatpush2.bf16.msra.mxu0 %v841
        %1142 = vmatprep.subr.bf16.mxu0 %v840
        %1143 = vmatpush2.bf16.msra.mxu0 %v839
        %1144 = vmatprep.mubr.bf16.mxu0 %v462
        %1145 = vmatmul.mubr.bf16.gmra.mxu0 %v461
        %v1146 = vpop.f32.mrf.mxu0
        %v1147 = vadd.f32 %v954, %v1146
        %v1148 = vpop.f32.mrf.mxu0
        %v1149 = vadd.f32 %v956, %v1148
        %v1150 = vpop.f32.mrf.mxu0
        %v1151 = vadd.f32 %v958, %v1150
        %v1152 = vpop.f32.mrf.mxu0
        %v1153 = vadd.f32 %v960, %v1152
        %1154 = vmatprep.mubr.bf16.mxu0 %v466
        %1155 = vmatmul.mubr.bf16.gmra.mxu0 %v465
        %v1156 = vpop.f32.mrf.mxu0
        %v1157 = vadd.f32 %v964, %v1156
        %v1158 = vpop.f32.mrf.mxu0
        %v1159 = vadd.f32 %v966, %v1158
        %v1160 = vpop.f32.mrf.mxu0
        %v1161 = vadd.f32 %v968, %v1160
        %v1162 = vpop.f32.mrf.mxu0
        %v1163 = vadd.f32 %v970, %v1162
        %1164 = vmatprep.mubr.bf16.mxu0 %v470
        %1165 = vmatmul.mubr.bf16.gmra.mxu0 %v469
        %v1166 = vpop.f32.mrf.mxu0
        %v1167 = vadd.f32 %v974, %v1166
        %v1168 = vpop.f32.mrf.mxu0
        %v1169 = vadd.f32 %v976, %v1168
        %v1170 = vpop.f32.mrf.mxu0
        %v1171 = vadd.f32 %v978, %v1170
        %v1172 = vpop.f32.mrf.mxu0
        %v1173 = vadd.f32 %v980, %v1172
        %1174 = vmatprep.mubr.bf16.mxu0 %v474
        %1175 = vmatmul.mubr.bf16.gmra.mxu0 %v473
        %v1176 = vpop.f32.mrf.mxu0
        %v1177 = vadd.f32 %v984, %v1176
        %v1178 = vpop.f32.mrf.mxu0
        %v1179 = vadd.f32 %v986, %v1178
        %v1180 = vpop.f32.mrf.mxu0
        %v1181 = vadd.f32 %v988, %v1180
        %v1182 = vpop.f32.mrf.mxu0
        %v1183 = vadd.f32 %v990, %v1182
        %1184 = vmatprep.mubr.bf16.mxu0 %v478
        %1185 = vmatmul.mubr.bf16.gmra.mxu0 %v477
        %v1186 = vpop.f32.mrf.mxu0
        %v1187 = vadd.f32 %v994, %v1186
        %v1188 = vpop.f32.mrf.mxu0
        %v1189 = vadd.f32 %v996, %v1188
        %v1190 = vpop.f32.mrf.mxu0
        %v1191 = vadd.f32 %v998, %v1190
        %v1192 = vpop.f32.mrf.mxu0
        %v1193 = vadd.f32 %v1000, %v1192
        %1194 = vmatprep.mubr.bf16.mxu0 %v482
        %1195 = vmatmul.mubr.bf16.gmra.mxu0 %v481
        %v1196 = vpop.f32.mrf.mxu0
        %v1197 = vadd.f32 %v1004, %v1196
        %v1198 = vpop.f32.mrf.mxu0
        %v1199 = vadd.f32 %v1006, %v1198
        %v1200 = vpop.f32.mrf.mxu0
        %v1201 = vadd.f32 %v1008, %v1200
        %v1202 = vpop.f32.mrf.mxu0
        %v1203 = vadd.f32 %v1010, %v1202
        %1204 = vmatprep.mubr.bf16.mxu0 %v486
        %1205 = vmatmul.mubr.bf16.gmra.mxu0 %v485
        %v1206 = vpop.f32.mrf.mxu0
        %v1207 = vadd.f32 %v1014, %v1206
        %v1208 = vpop.f32.mrf.mxu0
        %v1209 = vadd.f32 %v1016, %v1208
        %v1210 = vpop.f32.mrf.mxu0
        %v1211 = vadd.f32 %v1018, %v1210
        %v1212 = vpop.f32.mrf.mxu0
        %v1213 = vadd.f32 %v1020, %v1212
        %1214 = vmatprep.mubr.bf16.mxu0 %v490
        %1215 = vmatmul.mubr.bf16.gmra.mxu0 %v489
        %v1216 = vpop.f32.mrf.mxu0
        %v1217 = vadd.f32 %v1024, %v1216
        %v1218 = vpop.f32.mrf.mxu0
        %v1219 = vadd.f32 %v1026, %v1218
        %v1220 = vpop.f32.mrf.mxu0
        %v1221 = vadd.f32 %v1028, %v1220
        %v1222 = vpop.f32.mrf.mxu0
        %v1223 = vadd.f32 %v1030, %v1222
        %1224 = vmatprep.mubr.bf16.mxu0 %v494
        %1225 = vmatmul.mubr.bf16.gmra.mxu0 %v493
        %v1226 = vpop.f32.mrf.mxu0
        %v1227 = vadd.f32 %v1034, %v1226
        %v1228 = vpop.f32.mrf.mxu0
        %v1229 = vadd.f32 %v1036, %v1228
        %v1230 = vpop.f32.mrf.mxu0
        %v1231 = vadd.f32 %v1038, %v1230
        %v1232 = vpop.f32.mrf.mxu0
        %v1233 = vadd.f32 %v1040, %v1232
        %1234 = vmatprep.mubr.bf16.mxu0 %v498
        %1235 = vmatmul.mubr.bf16.gmra.mxu0 %v497
        %v1236 = vpop.f32.mrf.mxu0
        %v1237 = vadd.f32 %v1044, %v1236
        %v1238 = vpop.f32.mrf.mxu0
        %v1239 = vadd.f32 %v1046, %v1238
        %v1240 = vpop.f32.mrf.mxu0
        %v1241 = vadd.f32 %v1048, %v1240
        %v1242 = vpop.f32.mrf.mxu0
        %v1243 = vadd.f32 %v1050, %v1242
        %1244 = vmatprep.mubr.bf16.mxu0 %v502
        %1245 = vmatmul.mubr.bf16.gmra.mxu0 %v501
        %v1246 = vpop.f32.mrf.mxu0
        %v1247 = vadd.f32 %v1054, %v1246
        %v1248 = vpop.f32.mrf.mxu0
        %v1249 = vadd.f32 %v1056, %v1248
        %v1250 = vpop.f32.mrf.mxu0
        %v1251 = vadd.f32 %v1058, %v1250
        %v1252 = vpop.f32.mrf.mxu0
        %v1253 = vadd.f32 %v1060, %v1252
        %1254 = vmatprep.mubr.bf16.mxu0 %v506
        %1255 = vmatmul.mubr.bf16.gmra.mxu0 %v505
        %v1256 = vpop.f32.mrf.mxu0
        %v1257 = vadd.f32 %v1064, %v1256
        %v1258 = vpop.f32.mrf.mxu0
        %v1259 = vadd.f32 %v1066, %v1258
        %v1260 = vpop.f32.mrf.mxu0
        %v1261 = vadd.f32 %v1068, %v1260
        %v1262 = vpop.f32.mrf.mxu0
        %v1263 = vadd.f32 %v1070, %v1262
        %1264 = vmatprep.mubr.bf16.mxu0 %v510
        %1265 = vmatmul.mubr.bf16.gmra.mxu0 %v509
        %v1266 = vpop.f32.mrf.mxu0
        %v1267 = vadd.f32 %v1074, %v1266
        %v1268 = vpop.f32.mrf.mxu0
        %v1269 = vadd.f32 %v1076, %v1268
        %v1270 = vpop.f32.mrf.mxu0
        %v1271 = vadd.f32 %v1078, %v1270
        %v1272 = vpop.f32.mrf.mxu0
        %v1273 = vadd.f32 %v1080, %v1272
        %1274 = vmatprep.mubr.bf16.mxu0 %v514
        %1275 = vmatmul.mubr.bf16.gmra.mxu0 %v513
        %v1276 = vpop.f32.mrf.mxu0
        %v1277 = vadd.f32 %v1084, %v1276
        %v1278 = vpop.f32.mrf.mxu0
        %v1279 = vadd.f32 %v1086, %v1278
        %v1280 = vpop.f32.mrf.mxu0
        %v1281 = vadd.f32 %v1088, %v1280
        %v1282 = vpop.f32.mrf.mxu0
        %v1283 = vadd.f32 %v1090, %v1282
        %1284 = vmatprep.mubr.bf16.mxu0 %v518
        %1285 = vmatmul.mubr.bf16.gmra.mxu0 %v517
        %v1286 = vpop.f32.mrf.mxu0
        %v1287 = vadd.f32 %v1094, %v1286
        %v1288 = vpop.f32.mrf.mxu0
        %v1289 = vadd.f32 %v1096, %v1288
        %v1290 = vpop.f32.mrf.mxu0
        %v1291 = vadd.f32 %v1098, %v1290
        %v1292 = vpop.f32.mrf.mxu0
        %v1293 = vadd.f32 %v1100, %v1292
        %1294 = vmatprep.mubr.bf16.mxu0 %v522
        %1295 = vmatmul.mubr.bf16.gmra.mxu0 %v521
        %v1296 = vpop.f32.mrf.mxu0
        %v1297 = vadd.f32 %v1104, %v1296
        %v1298 = vpop.f32.mrf.mxu0
        %v1299 = vadd.f32 %v1106, %v1298
        %v1300 = vpop.f32.mrf.mxu0
        %v1301 = vadd.f32 %v1108, %v1300
        %v1302 = vpop.f32.mrf.mxu0
        %v1303 = vadd.f32 %v1110, %v1302
        %1304 = vdwg.mxu0
        %v1305 = vmax.f32 %v1147, 0.0
        %v1306 = vmax.f32 %v1149, 0.0
        %v1307 = vmax.f32 %v1151, 0.0
        %v1308 = vmax.f32 %v1153, 0.0
        %v1309 = vmax.f32 %v1157, 0.0
        %v1310 = vmax.f32 %v1159, 0.0
        %v1311 = vmax.f32 %v1161, 0.0
        %v1312 = vmax.f32 %v1163, 0.0
        %v1313 = vmax.f32 %v1167, 0.0
        %v1314 = vmax.f32 %v1169, 0.0
        %v1315 = vmax.f32 %v1171, 0.0
        %v1316 = vmax.f32 %v1173, 0.0
        %v1317 = vmax.f32 %v1177, 0.0
        %v1318 = vmax.f32 %v1179, 0.0
        %v1319 = vmax.f32 %v1181, 0.0
        %v1320 = vmax.f32 %v1183, 0.0
        %v1321 = vmax.f32 %v1187, 0.0
        %v1322 = vmax.f32 %v1189, 0.0
        %v1323 = vmax.f32 %v1191, 0.0
        %v1324 = vmax.f32 %v1193, 0.0
        %v1325 = vmax.f32 %v1197, 0.0
        %v1326 = vmax.f32 %v1199, 0.0
        %v1327 = vmax.f32 %v1201, 0.0
        %v1328 = vmax.f32 %v1203, 0.0
        %v1329 = vmax.f32 %v1207, 0.0
        %v1330 = vmax.f32 %v1209, 0.0
        %v1331 = vmax.f32 %v1211, 0.0
        %v1332 = vmax.f32 %v1213, 0.0
        %v1333 = vmax.f32 %v1217, 0.0
        %v1334 = vmax.f32 %v1219, 0.0
        %v1335 = vmax.f32 %v1221, 0.0
        %v1336 = vmax.f32 %v1223, 0.0
        %v1337 = vmax.f32 %v1227, 0.0
        %v1338 = vmax.f32 %v1229, 0.0
        %v1339 = vmax.f32 %v1231, 0.0
        %v1340 = vmax.f32 %v1233, 0.0
        %v1341 = vmax.f32 %v1237, 0.0
        %v1342 = vmax.f32 %v1239, 0.0
        %v1343 = vmax.f32 %v1241, 0.0
        %v1344 = vmax.f32 %v1243, 0.0
        %v1345 = vmax.f32 %v1247, 0.0
        %v1346 = vmax.f32 %v1249, 0.0
        %v1347 = vmax.f32 %v1251, 0.0
        %v1348 = vmax.f32 %v1253, 0.0
        %v1349 = vmax.f32 %v1257, 0.0
        %v1350 = vmax.f32 %v1259, 0.0
        %v1351 = vmax.f32 %v1261, 0.0
        %v1352 = vmax.f32 %v1263, 0.0
        %v1353 = vmax.f32 %v1267, 0.0
        %v1354 = vmax.f32 %v1269, 0.0
        %v1355 = vmax.f32 %v1271, 0.0
        %v1356 = vmax.f32 %v1273, 0.0
        %v1357 = vmax.f32 %v1277, 0.0
        %v1358 = vmax.f32 %v1279, 0.0
        %v1359 = vmax.f32 %v1281, 0.0
        %v1360 = vmax.f32 %v1283, 0.0
        %v1361 = vmax.f32 %v1287, 0.0
        %v1362 = vmax.f32 %v1289, 0.0
        %v1363 = vmax.f32 %v1291, 0.0
        %v1364 = vmax.f32 %v1293, 0.0
        %v1365 = vmax.f32 %v1297, 0.0
        %v1366 = vmax.f32 %v1299, 0.0
        %v1367 = vmax.f32 %v1301, 0.0
        %v1368 = vmax.f32 %v1303, 0.0
        %v1369 = vpack.c.bf16 %v1307, %v1305
        %v1370 = vpack.c.bf16 %v1308, %v1306
        %v1371 = vpack.c.bf16 %v1311, %v1309
        %v1372 = vpack.c.bf16 %v1312, %v1310
        %v1373 = vpack.c.bf16 %v1315, %v1313
        %v1374 = vpack.c.bf16 %v1316, %v1314
        %v1375 = vpack.c.bf16 %v1319, %v1317
        %v1376 = vpack.c.bf16 %v1320, %v1318
        %v1377 = vpack.c.bf16 %v1323, %v1321
        %v1378 = vpack.c.bf16 %v1324, %v1322
        %v1379 = vpack.c.bf16 %v1327, %v1325
        %v1380 = vpack.c.bf16 %v1328, %v1326
        %v1381 = vpack.c.bf16 %v1331, %v1329
        %v1382 = vpack.c.bf16 %v1332, %v1330
        %v1383 = vpack.c.bf16 %v1335, %v1333
        %v1384 = vpack.c.bf16 %v1336, %v1334
        %v1385 = vpack.c.bf16 %v1339, %v1337
        %v1386 = vpack.c.bf16 %v1340, %v1338
        %v1387 = vpack.c.bf16 %v1343, %v1341
        %v1388 = vpack.c.bf16 %v1344, %v1342
        %v1389 = vpack.c.bf16 %v1347, %v1345
        %v1390 = vpack.c.bf16 %v1348, %v1346
        %v1391 = vpack.c.bf16 %v1351, %v1349
        %v1392 = vpack.c.bf16 %v1352, %v1350
        %v1393 = vpack.c.bf16 %v1355, %v1353
        %v1394 = vpack.c.bf16 %v1356, %v1354
        %v1395 = vpack.c.bf16 %v1359, %v1357
        %v1396 = vpack.c.bf16 %v1360, %v1358
        %v1397 = vpack.c.bf16 %v1363, %v1361
        %v1398 = vpack.c.bf16 %v1364, %v1362
        %v1399 = vpack.c.bf16 %v1367, %v1365
        %v1400 = vpack.c.bf16 %v1368, %v1366
        %v1401 = vld [vmem:[#allocation8] sm:$0xf]
        %v1402 = vld [vmem:[#allocation8 + $0x4] sm:$0xf]
        %v1403 = vld [vmem:[#allocation8 + $0x8] sm:$0xf]
        %v1404 = vld [vmem:[#allocation8 + $0xc] sm:$0xf]
        %v1405 = vld [vmem:[#allocation8 + $0x10] sm:$0xf]
        %v1406 = vld [vmem:[#allocation8 + $0x14] sm:$0xf]
        %v1407 = vld [vmem:[#allocation8 + $0x18] sm:$0xf]
        %v1408 = vld [vmem:[#allocation8 + $0x1c] sm:$0xf]
        %v1409 = vld [vmem:[#allocation8 + $0x20] sm:$0xf]
        %v1410 = vld [vmem:[#allocation8 + $0x24] sm:$0xf]
        %v1411 = vld [vmem:[#allocation8 + $0x28] sm:$0xf]
        %v1412 = vld [vmem:[#allocation8 + $0x2c] sm:$0xf]
        %v1413 = vld [vmem:[#allocation8 + $0x30] sm:$0xf]
        %v1414 = vld [vmem:[#allocation8 + $0x34] sm:$0xf]
        %v1415 = vld [vmem:[#allocation8 + $0x38] sm:$0xf]
        %v1416 = vld [vmem:[#allocation8 + $0x3c] sm:$0xf]
        %v1417 = vld [vmem:[#allocation8 + $0x40] sm:$0xf]
        %v1418 = vld [vmem:[#allocation8 + $0x44] sm:$0xf]
        %v1419 = vld [vmem:[#allocation8 + $0x48] sm:$0xf]
        %v1420 = vld [vmem:[#allocation8 + $0x4c] sm:$0xf]
        %v1421 = vld [vmem:[#allocation8 + $0x50] sm:$0xf]
        %v1422 = vld [vmem:[#allocation8 + $0x54] sm:$0xf]
        %v1423 = vld [vmem:[#allocation8 + $0x58] sm:$0xf]
        %v1424 = vld [vmem:[#allocation8 + $0x5c] sm:$0xf]
        %v1425 = vld [vmem:[#allocation8 + $0x60] sm:$0xf]
        %v1426 = vld [vmem:[#allocation8 + $0x64] sm:$0xf]
        %v1427 = vld [vmem:[#allocation8 + $0x68] sm:$0xf]
        %v1428 = vld [vmem:[#allocation8 + $0x6c] sm:$0xf]
        %v1429 = vld [vmem:[#allocation8 + $0x70] sm:$0xf]
        %v1430 = vld [vmem:[#allocation8 + $0x74] sm:$0xf]
        %v1431 = vld [vmem:[#allocation8 + $0x78] sm:$0xf]
        %v1432 = vld [vmem:[#allocation8 + $0x7c] sm:$0xf]
        %v1433 = vld [vmem:[%s4] sm:$0x1]
        %v1435 = vlaneseq
        %v1436 = vshrl.u32 %v1435, 7
        %v1437 = vsub.s32 0, %v1436
        %v1438 = vrot.slane %v1433, %v1437
        %v1472 = vunpack.c.l.b16 %v1401
        %v1473 = vunpack.c.l.b16 %v1402
        %v1474 = vunpack.c.l.b16 %v1403
        %v1475 = vunpack.c.l.b16 %v1404
        %v1476 = vunpack.c.l.b16 %v1405
        %v1477 = vunpack.c.l.b16 %v1406
        %v1478 = vunpack.c.l.b16 %v1407
        %v1479 = vunpack.c.l.b16 %v1408
        %v1480 = vunpack.c.l.b16 %v1409
        %v1481 = vunpack.c.l.b16 %v1410
        %v1482 = vunpack.c.l.b16 %v1411
        %v1483 = vunpack.c.l.b16 %v1412
        %v1484 = vunpack.c.l.b16 %v1413
        %v1485 = vunpack.c.l.b16 %v1414
        %v1486 = vunpack.c.l.b16 %v1415
        %v1487 = vunpack.c.l.b16 %v1416
        %v1488 = vunpack.c.l.b16 %v1417
        %v1489 = vunpack.c.l.b16 %v1418
        %v1490 = vunpack.c.l.b16 %v1419
        %v1491 = vunpack.c.l.b16 %v1420
        %v1492 = vunpack.c.l.b16 %v1421
        %v1493 = vunpack.c.l.b16 %v1422
        %v1494 = vunpack.c.l.b16 %v1423
        %v1495 = vunpack.c.l.b16 %v1424
        %v1496 = vunpack.c.l.b16 %v1425
        %v1497 = vunpack.c.l.b16 %v1426
        %v1498 = vunpack.c.l.b16 %v1427
        %v1499 = vunpack.c.l.b16 %v1428
        %v1500 = vunpack.c.l.b16 %v1429
        %v1501 = vunpack.c.l.b16 %v1430
        %v1502 = vunpack.c.l.b16 %v1431
        %v1503 = vunpack.c.l.b16 %v1432
        %v1504 = vpack.c.b16 %v1473, %v1472
        %v1505 = vpack.c.b16 %v1475, %v1474
        %v1506 = vpack.c.b16 %v1477, %v1476
        %v1507 = vpack.c.b16 %v1479, %v1478
        %v1508 = vpack.c.b16 %v1481, %v1480
        %v1509 = vpack.c.b16 %v1483, %v1482
        %v1510 = vpack.c.b16 %v1485, %v1484
        %v1511 = vpack.c.b16 %v1487, %v1486
        %v1512 = vpack.c.b16 %v1489, %v1488
        %v1513 = vpack.c.b16 %v1491, %v1490
        %v1514 = vpack.c.b16 %v1493, %v1492
        %v1515 = vpack.c.b16 %v1495, %v1494
        %v1516 = vpack.c.b16 %v1497, %v1496
        %v1517 = vpack.c.b16 %v1499, %v1498
        %v1518 = vpack.c.b16 %v1501, %v1500
        %v1519 = vpack.c.b16 %v1503, %v1502
        %1536 = vmatprep.subr.bf16.mxu0 0
        %1537 = vmatpush1.bf16.msra.mxu0 %v1511
        %1538 = vmatprep.subr.bf16.mxu0 0
        %1539 = vmatpush1.bf16.msra.mxu0 %v1510
        %1540 = vmatprep.subr.bf16.mxu0 0
        %1541 = vmatpush1.bf16.msra.mxu0 %v1509
        %1542 = vmatprep.subr.bf16.mxu0 0
        %1543 = vmatpush1.bf16.msra.mxu0 %v1508
        %1544 = vmatprep.subr.bf16.mxu0 0
        %1545 = vmatpush1.bf16.msra.mxu0 %v1507
        %1546 = vmatprep.subr.bf16.mxu0 0
        %1547 = vmatpush1.bf16.msra.mxu0 %v1506
        %1548 = vmatprep.subr.bf16.mxu0 0
        %1549 = vmatpush1.bf16.msra.mxu0 %v1505
        %1550 = vmatprep.subr.bf16.mxu0 0
        %1551 = vmatpush1.bf16.msra.mxu0 %v1504
        %1552 = vmatprep.subr.bf16.mxu0 0
        %1553 = vmatpush2.bf16.msra.mxu0 %v1519
        %1554 = vmatprep.subr.bf16.mxu0 0
        %1555 = vmatpush2.bf16.msra.mxu0 %v1518
        %1556 = vmatprep.subr.bf16.mxu0 0
        %1557 = vmatpush2.bf16.msra.mxu0 %v1517
        %1558 = vmatprep.subr.bf16.mxu0 0
        %1559 = vmatpush2.bf16.msra.mxu0 %v1516
        %1560 = vmatprep.subr.bf16.mxu0 0
        %1561 = vmatpush2.bf16.msra.mxu0 %v1515
        %1562 = vmatprep.subr.bf16.mxu0 0
        %1563 = vmatpush2.bf16.msra.mxu0 %v1514
        %1564 = vmatprep.subr.bf16.mxu0 0
        %1565 = vmatpush2.bf16.msra.mxu0 %v1513
        %1566 = vmatprep.subr.bf16.mxu0 0
        %1567 = vmatpush2.bf16.msra.mxu0 %v1512
        %1568 = vmatprep.mubr.bf16.mxu0 %v1370
        %1569 = vmatmul.mubr.bf16.gmra.mxu0 %v1369
        %v1570 = vpop.f32.mrf.mxu0
        %v1571 = vadd.f32 %v1438, %v1570
        %v1572 = vpop.f32.mrf.mxu0
        %v1573 = vpop.f32.mrf.mxu0
        %v1574 = vadd.f32 %v1438, %v1573
        %v1575 = vpop.f32.mrf.mxu0
        %1576 = vmatprep.mubr.bf16.mxu0 %v1372
        %1577 = vmatmul.mubr.bf16.gmra.mxu0 %v1371
        %v1578 = vpop.f32.mrf.mxu0
        %v1579 = vadd.f32 %v1438, %v1578
        %v1580 = vpop.f32.mrf.mxu0
        %v1581 = vpop.f32.mrf.mxu0
        %v1582 = vadd.f32 %v1438, %v1581
        %v1583 = vpop.f32.mrf.mxu0
        %1584 = vmatprep.mubr.bf16.mxu0 %v1374
        %1585 = vmatmul.mubr.bf16.gmra.mxu0 %v1373
        %v1586 = vpop.f32.mrf.mxu0
        %v1587 = vadd.f32 %v1438, %v1586
        %v1588 = vpop.f32.mrf.mxu0
        %v1589 = vpop.f32.mrf.mxu0
        %v1590 = vadd.f32 %v1438, %v1589
        %v1591 = vpop.f32.mrf.mxu0
        %1592 = vmatprep.mubr.bf16.mxu0 %v1376
        %1593 = vmatmul.mubr.bf16.gmra.mxu0 %v1375
        %v1594 = vpop.f32.mrf.mxu0
        %v1595 = vadd.f32 %v1438, %v1594
        %v1596 = vpop.f32.mrf.mxu0
        %v1597 = vpop.f32.mrf.mxu0
        %v1598 = vadd.f32 %v1438, %v1597
        %v1599 = vpop.f32.mrf.mxu0
        %1600 = vmatprep.mubr.bf16.mxu0 %v1378
        %1601 = vmatmul.mubr.bf16.gmra.mxu0 %v1377
        %v1602 = vpop.f32.mrf.mxu0
        %v1603 = vadd.f32 %v1438, %v1602
        %v1604 = vpop.f32.mrf.mxu0
        %v1605 = vpop.f32.mrf.mxu0
        %v1606 = vadd.f32 %v1438, %v1605
        %v1607 = vpop.f32.mrf.mxu0
        %1608 = vmatprep.mubr.bf16.mxu0 %v1380
        %1609 = vmatmul.mubr.bf16.gmra.mxu0 %v1379
        %v1610 = vpop.f32.mrf.mxu0
        %v1611 = vadd.f32 %v1438, %v1610
        %v1612 = vpop.f32.mrf.mxu0
        %v1613 = vpop.f32.mrf.mxu0
        %v1614 = vadd.f32 %v1438, %v1613
        %v1615 = vpop.f32.mrf.mxu0
        %1616 = vmatprep.mubr.bf16.mxu0 %v1382
        %1617 = vmatmul.mubr.bf16.gmra.mxu0 %v1381
        %v1618 = vpop.f32.mrf.mxu0
        %v1619 = vadd.f32 %v1438, %v1618
        %v1620 = vpop.f32.mrf.mxu0
        %v1621 = vpop.f32.mrf.mxu0
        %v1622 = vadd.f32 %v1438, %v1621
        %v1623 = vpop.f32.mrf.mxu0
        %1624 = vmatprep.mubr.bf16.mxu0 %v1384
        %1625 = vmatmul.mubr.bf16.gmra.mxu0 %v1383
        %v1626 = vpop.f32.mrf.mxu0
        %v1627 = vadd.f32 %v1438, %v1626
        %v1628 = vpop.f32.mrf.mxu0
        %v1629 = vpop.f32.mrf.mxu0
        %v1630 = vadd.f32 %v1438, %v1629
        %v1631 = vpop.f32.mrf.mxu0
        %1632 = vmatprep.mubr.bf16.mxu0 %v1386
        %1633 = vmatmul.mubr.bf16.gmra.mxu0 %v1385
        %v1634 = vpop.f32.mrf.mxu0
        %v1635 = vadd.f32 %v1438, %v1634
        %v1636 = vpop.f32.mrf.mxu0
        %v1637 = vpop.f32.mrf.mxu0
        %v1638 = vadd.f32 %v1438, %v1637
        %v1639 = vpop.f32.mrf.mxu0
        %1640 = vmatprep.mubr.bf16.mxu0 %v1388
        %1641 = vmatmul.mubr.bf16.gmra.mxu0 %v1387
        %v1642 = vpop.f32.mrf.mxu0
        %v1643 = vadd.f32 %v1438, %v1642
        %v1644 = vpop.f32.mrf.mxu0
        %v1645 = vpop.f32.mrf.mxu0
        %v1646 = vadd.f32 %v1438, %v1645
        %v1647 = vpop.f32.mrf.mxu0
        %1648 = vmatprep.mubr.bf16.mxu0 %v1390
        %1649 = vmatmul.mubr.bf16.gmra.mxu0 %v1389
        %v1650 = vpop.f32.mrf.mxu0
        %v1651 = vadd.f32 %v1438, %v1650
        %v1652 = vpop.f32.mrf.mxu0
        %v1653 = vpop.f32.mrf.mxu0
        %v1654 = vadd.f32 %v1438, %v1653
        %v1655 = vpop.f32.mrf.mxu0
        %1656 = vmatprep.mubr.bf16.mxu0 %v1392
        %1657 = vmatmul.mubr.bf16.gmra.mxu0 %v1391
        %v1658 = vpop.f32.mrf.mxu0
        %v1659 = vadd.f32 %v1438, %v1658
        %v1660 = vpop.f32.mrf.mxu0
        %v1661 = vpop.f32.mrf.mxu0
        %v1662 = vadd.f32 %v1438, %v1661
        %v1663 = vpop.f32.mrf.mxu0
        %1664 = vmatprep.mubr.bf16.mxu0 %v1394
        %1665 = vmatmul.mubr.bf16.gmra.mxu0 %v1393
        %v1666 = vpop.f32.mrf.mxu0
        %v1667 = vadd.f32 %v1438, %v1666
        %v1668 = vpop.f32.mrf.mxu0
        %v1669 = vpop.f32.mrf.mxu0
        %v1670 = vadd.f32 %v1438, %v1669
        %v1671 = vpop.f32.mrf.mxu0
        %1672 = vmatprep.mubr.bf16.mxu0 %v1396
        %1673 = vmatmul.mubr.bf16.gmra.mxu0 %v1395
        %v1674 = vpop.f32.mrf.mxu0
        %v1675 = vadd.f32 %v1438, %v1674
        %v1676 = vpop.f32.mrf.mxu0
        %v1677 = vpop.f32.mrf.mxu0
        %v1678 = vadd.f32 %v1438, %v1677
        %v1679 = vpop.f32.mrf.mxu0
        %1680 = vmatprep.mubr.bf16.mxu0 %v1398
        %1681 = vmatmul.mubr.bf16.gmra.mxu0 %v1397
        %v1682 = vpop.f32.mrf.mxu0
        %v1683 = vadd.f32 %v1438, %v1682
        %v1684 = vpop.f32.mrf.mxu0
        %v1685 = vpop.f32.mrf.mxu0
        %v1686 = vadd.f32 %v1438, %v1685
        %v1687 = vpop.f32.mrf.mxu0
        %1688 = vmatprep.mubr.bf16.mxu0 %v1400
        %1689 = vmatmul.mubr.bf16.gmra.mxu0 %v1399
        %v1690 = vpop.f32.mrf.mxu0
        %v1691 = vadd.f32 %v1438, %v1690
        %v1692 = vpop.f32.mrf.mxu0
        %v1693 = vpop.f32.mrf.mxu0
        %v1694 = vadd.f32 %v1438, %v1693
        %v1695 = vpop.f32.mrf.mxu0
        %1696 = vdwg.mxu0
        %v1697 = vmax.f32 %v1571, 0.0
        %v1698 = vmax.f32 %v1574, 0.0
        %v1699 = vmax.f32 %v1579, 0.0
        %v1700 = vmax.f32 %v1582, 0.0
        %v1701 = vmax.f32 %v1587, 0.0
        %v1702 = vmax.f32 %v1590, 0.0
        %v1703 = vmax.f32 %v1595, 0.0
        %v1704 = vmax.f32 %v1598, 0.0
        %v1705 = vmax.f32 %v1603, 0.0
        %v1706 = vmax.f32 %v1606, 0.0
        %v1707 = vmax.f32 %v1611, 0.0
        %v1708 = vmax.f32 %v1614, 0.0
        %v1709 = vmax.f32 %v1619, 0.0
        %v1710 = vmax.f32 %v1622, 0.0
        %v1711 = vmax.f32 %v1627, 0.0
        %v1712 = vmax.f32 %v1630, 0.0
        %v1713 = vmax.f32 %v1635, 0.0
        %v1714 = vmax.f32 %v1638, 0.0
        %v1715 = vmax.f32 %v1643, 0.0
        %v1716 = vmax.f32 %v1646, 0.0
        %v1717 = vmax.f32 %v1651, 0.0
        %v1718 = vmax.f32 %v1654, 0.0
        %v1719 = vmax.f32 %v1659, 0.0
        %v1720 = vmax.f32 %v1662, 0.0
        %v1721 = vmax.f32 %v1667, 0.0
        %v1722 = vmax.f32 %v1670, 0.0
        %v1723 = vmax.f32 %v1675, 0.0
        %v1724 = vmax.f32 %v1678, 0.0
        %v1725 = vmax.f32 %v1683, 0.0
        %v1726 = vmax.f32 %v1686, 0.0
        %v1727 = vmax.f32 %v1691, 0.0
        %v1728 = vmax.f32 %v1694, 0.0
        %v1729 = vld [vmem:[%s5] sm:$0x1]
        %v1730 = vpack.c.bf16 %v1698, %v1697
        %v1731 = vpack.c.bf16 %v1700, %v1699
        %v1732 = vpack.c.bf16 %v1702, %v1701
        %v1733 = vpack.c.bf16 %v1704, %v1703
        %v1734 = vpack.c.bf16 %v1706, %v1705
        %v1735 = vpack.c.bf16 %v1708, %v1707
        %v1736 = vpack.c.bf16 %v1710, %v1709
        %v1737 = vpack.c.bf16 %v1712, %v1711
        %v1738 = vpack.c.bf16 %v1714, %v1713
        %v1739 = vpack.c.bf16 %v1716, %v1715
        %v1740 = vpack.c.bf16 %v1718, %v1717
        %v1741 = vpack.c.bf16 %v1720, %v1719
        %v1742 = vpack.c.bf16 %v1722, %v1721
        %v1743 = vpack.c.bf16 %v1724, %v1723
        %v1744 = vpack.c.bf16 %v1726, %v1725
        %v1745 = vpack.c.bf16 %v1728, %v1727
        %s1746 = sld [smem:[#allocation2]]
        %v1747 = vstv %s1746
        %1748 = vmatprep.subr.bf16.mxu0 0
        %1749 = vmatpush1.bf16.xpose.msra.mxu0 %v1737
        %1750 = vmatprep.subr.bf16.mxu0 0
        %1751 = vmatpush1.bf16.xpose.msra.mxu0 %v1736
        %1752 = vmatprep.subr.bf16.mxu0 0
        %1753 = vmatpush1.bf16.xpose.msra.mxu0 %v1735
        %1754 = vmatprep.subr.bf16.mxu0 0
        %1755 = vmatpush1.bf16.xpose.msra.mxu0 %v1734
        %1756 = vmatprep.subr.bf16.mxu0 0
        %1757 = vmatpush1.bf16.xpose.msra.mxu0 %v1733
        %1758 = vmatprep.subr.bf16.mxu0 0
        %1759 = vmatpush1.bf16.xpose.msra.mxu0 %v1732
        %1760 = vmatprep.subr.bf16.mxu0 0
        %1761 = vmatpush1.bf16.xpose.msra.mxu0 %v1731
        %1762 = vmatprep.subr.bf16.mxu0 0
        %1763 = vmatpush1.bf16.xpose.msra.mxu0 %v1730
        %1764 = vmatprep.subr.bf16.mxu0 0
        %1765 = vmatpush2.bf16.xpose.msra.mxu0 %v1745
        %1766 = vmatprep.subr.bf16.mxu0 0
        %1767 = vmatpush2.bf16.xpose.msra.mxu0 %v1744
        %1768 = vmatprep.subr.bf16.mxu0 0
        %1769 = vmatpush2.bf16.xpose.msra.mxu0 %v1743
        %1770 = vmatprep.subr.bf16.mxu0 0
        %1771 = vmatpush2.bf16.xpose.msra.mxu0 %v1742
        %1772 = vmatprep.subr.bf16.mxu0 0
        %1773 = vmatpush2.bf16.xpose.msra.mxu0 %v1741
        %1774 = vmatprep.subr.bf16.mxu0 0
        %1775 = vmatpush2.bf16.xpose.msra.mxu0 %v1740
        %1776 = vmatprep.subr.bf16.mxu0 0
        %1777 = vmatpush2.bf16.xpose.msra.mxu0 %v1739
        %1778 = vmatprep.subr.bf16.mxu0 0
        %1779 = vmatpush2.bf16.xpose.msra.mxu0 %v1738
        %1780 = vmatprep.mubr.bf16.mxu0 0
        %1781 = vmatmul.mubr.bf16.gmra.mxu0 %v1729
        %v1782 = vpop.f32.mrf.mxu0
        %v1783 = vadd.f32 %v1747, %v1782
        %v1784 = vpop.f32.mrf.mxu0
        %v1785 = vadd.f32 %v1747, %v1784
        %v1786 = vpop.f32.mrf.mxu0
        %v1787 = vpop.f32.mrf.mxu0
        %1788 = vdwg.mxu0
        %v1791 = vcombine.low %v1783, %v1785
        %v1793 = vunpack.c.l.s4 1966171168
        %v1794 = vunpack.c.0.s8 %v1793
        %v1795 = vlaneseq
        %v1796 = vshrl.u32 %v1795, 7
        %v1797 = vsub.s32 %v1794, %v1796
        %v1798 = vrot.slane %v1791, %v1797
        %v1800 = vunpack.c.l.s4 1966171168
        %v1801 = vunpack.c.0.s8 %v1800
        %v1802 = vlaneseq
        %v1803 = vshrl.u32 %v1802, 7
        %v1804 = vsub.s32 %v1801, %v1803
        %v1805 = vrot.slane %v1798, %v1804
        %v1807 = vlaneseq
        %vm1808 = vcmp.ge.s32.totalorder %v1807, 0
        %vm1809 = vcmp.lt.s32.totalorder %v1807, 256
        %vm1810 = vmand %vm1808, %vm1809
        %1811 = vst.msk [vmem:[%s327] sm:$0x3] %vm1810, %v1805
        %s1812 = sand.u32 %s186, 1
        %s1813 = scalar_lea.sflag [#allocation5], %s1812
        %s1814 = sand.u32 %s186, 1
        %s1815 = smul.addr %s1814, 2
        %s1816 = scalar_lea.vmem [#allocation9], %s1815
        // Predicated region
        $region61: #{discriminator_forward.1} parent=47 // pred_check
          %p1817 = pneg %p196
        $region62: #{discriminator_forward.1} parent=47 // pred_check_branch
          %1819 = sbr.rel (%p1817) target = $region64
        $region63: #{discriminator_forward.1} parent=47 // pred_region
          %s1820 = smul.u32 2, %s26
          %s1822 = ssub.s32 32, 32
          %1823 = vsyncadd %s1813, %s1822
          %s1824 = smul.addr %s1820, 16
          %s1825 = scalar_lea.hbm %s7, %s1824
          %s1827 = sshll.u32 %s1816, 4
          %s1828 = int_to_ptr.vmem [resolvable:$true] %s1827
          %1830 = dma.vmem_to_hbm [thread:$0]  %s1828, 32, %s1825, %s1813
        $region64: #{discriminator_forward.1} parent=47 // pred_fallthru
          _
      $region48: #{discriminator_forward.1} parent=5 // pred_fallthru
        _
      %p1831 = scmp.le.s32.totalorder 2, %s21
      // Predicated region
      $region65: #{discriminator_forward.1} parent=5 // pred_check
        %p1832 = pneg %p1831
      $region66: #{discriminator_forward.1} parent=5 // pred_check_branch
        %1834 = sbr.rel (%p1832) target = $region68
      $region67: #{discriminator_forward.1} parent=5 // pred_region
        %s1835 = ssub.s32 %s21, 2
        // Predicated region
        $region69: #{discriminator_forward.1} parent=67 // pred_check
          %p1836 = pneg %p202
        $region70: #{discriminator_forward.1} parent=67 // pred_check_branch
          %1838 = sbr.rel (%p1836) target = $region72
        $region71: #{discriminator_forward.1} parent=67 // pred_region
          %s1839 = sand.u32 %s187, 1
          %s1840 = scalar_lea.sflag [#allocation5], %s1839
          %s1841 = sand.u32 %s187, 1
          %s1842 = smul.addr %s1841, 2
          %s1843 = scalar_lea.vmem [#allocation9], %s1842
          %1844 = dma.done %s1840, 32
        $region72: #{discriminator_forward.1} parent=67 // pred_fallthru
          _
      $region68: #{discriminator_forward.1} parent=5 // pred_fallthru
        _
    $region6: #{discriminator_forward.1} parent=1 // loop_footer
      %s25 = sadd.s32 1, %s21
    $region7: #{discriminator_forward.1} parent=1 // loop_footer_branch
      %20 = sbr.rel target = $region3
    $region8: #{discriminator_forward.1} parent=1 // loop_exit
      _
    %1845 = vsyncpa [#allocation4], 1
    %s1846 = scalar_lea.sflag [#allocation4], 1
    %1847 = vsyncpa %s1846, 1
    %1848 = vsyncpa [#allocation7], 1
    %1849 = vsyncpa [#allocation5], 1
    %s1850 = scalar_lea.sflag [#allocation5], 1
    %1851 = vsyncpa %s1850, 1

</llo_original>
